<compile_context>
chip_gen: v6e
topology: v6e:2x2x1
jax: 0.10.0
libtpu: 0.0.40
codegen_flags: <defaults>
</compile_context>

<pallas_src>
import jax
import jax.numpy as jnp
from jax.experimental import pallas as pl
from jax.experimental.pallas import tpu as pltpu

LANE = 128
_MIB = 1 << 20


def _round_up(v, m):
    return (v + m - 1) // m * m


def _vmem_limit(nbytes):
    # Clamp to [16 MiB, 64 MiB]; 64 MiB is v7x's physical VMEM (v5e/v6e: 128).
    return int(min(max(_round_up(int(nbytes), _MIB), 16 * _MIB), 64 * _MIB))


# ---------------------------------------------------------------------------
# Kernel 1: normalized adjacency  A_norm = D^-1/2 (A + I) D^-1/2   (bf16).
# Built once per graph and reused by all three layers (cache-able across
# forward calls for static graphs).
# TODO(synk): for large N/E this build should be edge-blocked (accumulate cnt
# over E tiles) or hoisted/cached entirely outside the per-forward path.
# ---------------------------------------------------------------------------
def _build_a_norm_kernel(er_ref, a_ref):
    n_pad = a_ref.shape[0]
    e_pad = er_ref.shape[1]

    src = er_ref[0:1, :]                       # (1, E) int32, -1 for padded edges
    dst = er_ref[1:2, :]                       # (1, E)

    # Edge one-hots, (N, E) orientation only (padded edges -> all-zero columns).
    iota_ne = jax.lax.broadcasted_iota(jnp.int32, (n_pad, e_pad), 0)
    src_oh = jnp.where(iota_ne == src, 1.0, 0.0).astype(jnp.bfloat16)   # (N, E)
    dst_oh = jnp.where(iota_ne == dst, 1.0, 0.0).astype(jnp.bfloat16)   # (N, E)

    # Directed edge-count matrix in ONE MXU pass (rhs contracted on its last
    # dim == SRC @ DST^T); symmetrize with a cheap XLU transpose + add.
    cnt_dir = jax.lax.dot_general(
        src_oh, dst_oh, (((1,), (1,)), ((), ())),
        preferred_element_type=jnp.float32)                              # (N, N)

    row_nn = jax.lax.broadcasted_iota(jnp.int32, (n_pad, n_pad), 0)
    col_nn = jax.lax.broadcasted_iota(jnp.int32, (n_pad, n_pad), 1)
    eye = jnp.where(row_nn == col_nn, 1.0, 0.0)

    a_hat = jnp.minimum(cnt_dir + cnt_dir.T, 1.0) + eye                  # (N, N) f32

    # Degrees (a_hat is symmetric, so compute the vector once): lane-oriented
    # copy via a sublane reduce, sublane-oriented copy via an MXU matvec —
    # no cross-lane (XLU) reduction.
    d_c = jax.lax.rsqrt(
        jnp.maximum(jnp.sum(a_hat, axis=0, keepdims=True), 1.0))         # (1, N)
    ones_blk = jnp.ones((n_pad, LANE), jnp.bfloat16)
    deg_r = jnp.dot(a_hat.astype(jnp.bfloat16), ones_blk,
                    preferred_element_type=jnp.float32)[:, 0:1]          # (N, 1)
    d_r = jax.lax.rsqrt(jnp.maximum(deg_r, 1.0))

    a_ref[...] = ((a_hat * d_r) * d_c).astype(jnp.bfloat16)


def _build_a_norm(er, n_pad, e_pad):
    vmem = pl.BlockSpec(memory_space=pltpu.MemorySpace.VMEM)
    adj_bytes = (8 * n_pad * e_pad          # bf16 one-hots + int32 iota
                 + 28 * n_pad * n_pad       # cnt, cnt^T, a_hat, eye (f32) + bf16 out
                 + 6 * n_pad * LANE
                 + 2 * _MIB)
    return pl.pallas_call(
        _build_a_norm_kernel,
        out_shape=jax.ShapeDtypeStruct((n_pad, n_pad), jnp.bfloat16),
        in_specs=[vmem],
        out_specs=vmem,
        compiler_params=pltpu.CompilerParams(
            vmem_limit_bytes=_vmem_limit(adj_bytes)),
    )(er)


# ---------------------------------------------------------------------------
# Layer kernels (row-blocked over nodes).
# ---------------------------------------------------------------------------
def _project_kernel(x_ref, w_ref, out_ref):
    # out_tile = X_tile @ W     (bf16 operands, f32 accumulate, bf16 carry)
    out_ref[...] = jnp.dot(
        x_ref[...], w_ref[...],
        preferred_element_type=jnp.float32).astype(out_ref.dtype)


def _agg_relu_project_kernel(a_ref, xw_ref, b_ref, wn_ref, out_ref):
    # h = relu(A_tile @ XW + b)           (f32 accumulate / elementwise)
    h = jnp.dot(a_ref[...], xw_ref[...], preferred_element_type=jnp.float32)
    h = jnp.maximum(h + b_ref[...], 0.0)
    # Fuse the NEXT layer's projection: out_tile = h @ W_next  (bf16 carry).
    out_ref[...] = jnp.dot(
        h.astype(jnp.bfloat16), wn_ref[...],
        preferred_element_type=jnp.float32).astype(out_ref.dtype)


def _agg_final_kernel(a_ref, xw_ref, b_ref, out_ref):
    h = jnp.dot(a_ref[...], xw_ref[...], preferred_element_type=jnp.float32)
    out_ref[...] = (h + b_ref[...]).astype(out_ref.dtype)


def _row_parallel_params(nbytes):
    return pltpu.CompilerParams(
        dimension_semantics=("parallel",),     # shard row tiles over v7x's 2 TCs
        vmem_limit_bytes=_vmem_limit(nbytes))


def _project(x, w, tm):
    n_pad, f = x.shape
    c = w.shape[1]
    nbytes = 2 * (tm * f * 2 + f * c * 2 + tm * c * 2) + tm * c * 4 + 2 * _MIB
    return pl.pallas_call(
        _project_kernel,
        out_shape=jax.ShapeDtypeStruct((n_pad, c), jnp.bfloat16),
        grid=(n_pad // tm,),
        in_specs=[pl.BlockSpec((tm, f), lambda i: (i, 0)),     # X row tile
                  pl.BlockSpec((f, c), lambda i: (0, 0))],     # W (resident)
        out_specs=pl.BlockSpec((tm, c), lambda i: (i, 0)),
        compiler_params=_row_parallel_params(nbytes),
    )(x, w)


def _agg_relu_project(a_norm, xw, b, w_next, tm):
    n_pad = a_norm.shape[0]
    ci = xw.shape[1]
    co = w_next.shape[1]
    nbytes = (2 * (tm * n_pad * 2 + n_pad * ci * 2 + ci * co * 2 + tm * co * 2)
              + tm * ci * 4 + tm * co * 4 + 2 * _MIB)
    return pl.pallas_call(
        _agg_relu_project_kernel,
        out_shape=jax.ShapeDtypeStruct((n_pad, co), jnp.bfloat16),
        grid=(n_pad // tm,),
        in_specs=[pl.BlockSpec((tm, n_pad), lambda i: (i, 0)),  # A row tile (streamed)
                  pl.BlockSpec((n_pad, ci), lambda i: (0, 0)),  # XW (resident)
                  pl.BlockSpec((1, ci), lambda i: (0, 0)),      # bias
                  pl.BlockSpec((ci, co), lambda i: (0, 0))],    # next-layer W
        out_specs=pl.BlockSpec((tm, co), lambda i: (i, 0)),
        compiler_params=_row_parallel_params(nbytes),
    )(a_norm, xw, b, w_next)


def _agg_final(a_norm, xw, b, tm):
    n_pad = a_norm.shape[0]
    ci = xw.shape[1]
    nbytes = (2 * (tm * n_pad * 2 + n_pad * ci * 2 + tm * ci * 4)
              + tm * ci * 4 + 2 * _MIB)
    return pl.pallas_call(
        _agg_final_kernel,
        out_shape=jax.ShapeDtypeStruct((n_pad, ci), jnp.float32),
        grid=(n_pad // tm,),
        in_specs=[pl.BlockSpec((tm, n_pad), lambda i: (i, 0)),
                  pl.BlockSpec((n_pad, ci), lambda i: (0, 0)),
                  pl.BlockSpec((1, ci), lambda i: (0, 0))],
        out_specs=pl.BlockSpec((tm, ci), lambda i: (i, 0)),
        compiler_params=_row_parallel_params(nbytes),
    )(a_norm, xw, b)


# ---------------------------------------------------------------------------
# Forward wrapper.
# ---------------------------------------------------------------------------
def _pad_w(w, r, c):
    return jnp.zeros((r, c), jnp.bfloat16).at[:w.shape[0], :w.shape[1]].set(
        w.astype(jnp.bfloat16))


def _pad_b(b, c):
    return jnp.zeros((1, c), jnp.float32).at[0, :b.shape[0]].set(
        b.astype(jnp.float32))


@jax.jit
def gcn_encoder_forward(x, edge_index, params):
    """Pallas forward. x: [N, F] f32, edge_index: [2, E] int32 -> [N, out] f32."""
    n, f = x.shape
    hidden = params["w1"].shape[1]
    out_c = params["w_mu"].shape[1]
    e = edge_index.shape[1]

    # Lane-dense padding: N, E and all feature dims rounded up to 128.
    n_pad = _round_up(n, LANE)
    e_pad = _round_up(e, LANE)
    f_pad = _round_up(f, LANE)
    h_pad = _round_up(hidden, LANE)
    c_pad = _round_up(out_c, LANE)

    xp = jnp.zeros((n_pad, f_pad), jnp.bfloat16).at[:n, :f].set(
        x.astype(jnp.bfloat16))
    er = jnp.full((2, e_pad), -1, jnp.int32).at[:, :e].set(
        edge_index.astype(jnp.int32))

    w1 = _pad_w(params["w1"], f_pad, h_pad); b1 = _pad_b(params["b1"], h_pad)
    w2 = _pad_w(params["w2"], h_pad, h_pad); b2 = _pad_b(params["b2"], h_pad)
    w3 = _pad_w(params["w_mu"], h_pad, c_pad); b3 = _pad_b(params["b_mu"], c_pad)

    # Normalized adjacency: built once, reused by all three layers.
    a_norm = _build_a_norm(er, n_pad, e_pad)

    # Row-tile size: 256 fills v6e/v7x's 2x256x256 MXU; 128 otherwise (and for
    # the toy N_pad=128 case).  v5e (4x128x128) is equally served by 128.
    tm = 256 if n_pad % 256 == 0 else 128

    xw1 = _project(xp, w1, tm)                        # X @ W1
    xw2 = _agg_relu_project(a_norm, xw1, b1, w2, tm)  # relu(A@XW1 + b1) @ W2
    xw3 = _agg_relu_project(a_norm, xw2, b2, w3, tm)  # relu(A@XW2 + b2) @ W3
    out = _agg_final(a_norm, xw3, b3, tm)             # A@XW3 + b3   (conv_mu)

    return out[:n, :out_c]


# ---------------------------------------------------------------------------
# Pure-JAX f32 reference (same adjacency convention as the kernels).
# ---------------------------------------------------------------------------
def gcn_encoder_reference(x, edge_index, params):
    n = x.shape[0]
    src, dst = edge_index[0], edge_index[1]
    a = jnp.zeros((n, n), jnp.float32)
    a = a.at[src, dst].set(1.0)
    a = a.at[dst, src].set(1.0)
    a = a + jnp.eye(n, dtype=jnp.float32)
    d = jax.lax.rsqrt(jnp.maximum(a.sum(axis=1), 1.0))
    a_norm = a * d[:, None] * d[None, :]

    def layer(h, w, b, relu):
        h = a_norm @ (h @ w) + b[None, :]
        return jnp.maximum(h, 0.0) if relu else h

    h = layer(x, params["w1"], params["b1"], True)
    h = layer(h, params["w2"], params["b2"], True)
    return layer(h, params["w_mu"], params["b_mu"], False)


def init_params(key, f_in, hidden, out_c):
    ks = jax.random.split(key, 6)

    def glorot(k, shape):
        lim = (6.0 / (shape[0] + shape[1])) ** 0.5
        return jax.random.uniform(k, shape, jnp.float32, -lim, lim)

    def bias(k, m):
        return jax.random.uniform(k, (m,), jnp.float32, -0.1, 0.1)

    return {
        "w1": glorot(ks[0], (f_in, hidden)),    "b1": bias(ks[1], hidden),
        "w2": glorot(ks[2], (hidden, hidden)),  "b2": bias(ks[3], hidden),
        "w_mu": glorot(ks[4], (hidden, out_c)), "b_mu": bias(ks[5], out_c),
    }


if __name__ == "__main__":
    key = jax.random.PRNGKey(0)
    k_x, k_e, k_p = jax.random.split(key, 3)

    N = 16       # nodes
    F_IN = 32    # input features
    HID = 32     # hidden channels
    OUT = 16     # output (latent) channels
    E = 24       # edges

    x = jax.random.normal(k_x, (N, F_IN), dtype=jnp.float32)
    edge_index = jax.random.randint(k_e, (2, E), 0, N, dtype=jnp.int32)
    params = init_params(k_p, F_IN, HID, OUT)

    out = gcn_encoder_forward(x, edge_index, params)
    jax.block_until_ready(out)

    assert out.shape == (N, OUT)
    assert bool(jnp.all(jnp.isfinite(out)))

    # Pure-JAX f32 reference; loose tolerance accounts for bf16 MXU operands.
    ref = gcn_encoder_reference(x, edge_index, params)
    err = float(jnp.max(jnp.abs(out - ref)))
    scale = 1.0 + float(jnp.max(jnp.abs(ref)))
    assert err <= 0.05 * scale, f"max abs err {err} vs scale {scale}"

    print("KERNEL_OK")
</pallas_src>

<mosaic_0001>
module attributes {stable_mosaic.version = 11 : i64} {
  func.func @_build_a_norm_kernel(%arg0: memref<2x128xi32, #tpu.memory_space<vmem>>, %arg1: memref<128x128xbf16, #tpu.memory_space<vmem>>) attributes {dimension_semantics = [], scalar_prefetch = 0 : i64, scratch_operands = 0 : i64, tpu.core_type = #tpu.core_type<tc>} {
    %c0 = arith.constant 0 : index
    %c0_0 = arith.constant 0 : index
    %0 = vector.load %arg0[%c0, %c0_0] : memref<2x128xi32, #tpu.memory_space<vmem>>, vector<1x128xi32>
    %c1 = arith.constant 1 : index
    %c0_1 = arith.constant 0 : index
    %1 = vector.load %arg0[%c1, %c0_1] : memref<2x128xi32, #tpu.memory_space<vmem>>, vector<1x128xi32>
    %2 = tpu.iota {dimensions = array<i32: 0>} : vector<128x128xi32>
    %3 = vector.broadcast %0 : vector<1x128xi32> to vector<128x128xi32>
    %4 = arith.cmpi eq, %2, %3 : vector<128x128xi32>
    %cst = arith.constant 1.000000e+00 : f32
    %cst_2 = arith.constant 0.000000e+00 : f32
    %5 = vector.broadcast %cst : f32 to vector<128x128xf32>
    %6 = vector.broadcast %cst_2 : f32 to vector<128x128xf32>
    %7 = arith.select %4, %5, %6 : vector<128x128xi1>, vector<128x128xf32>
    %8 = arith.truncf %7 : vector<128x128xf32> to vector<128x128xbf16>
    %9 = vector.broadcast %1 : vector<1x128xi32> to vector<128x128xi32>
    %10 = arith.cmpi eq, %2, %9 : vector<128x128xi32>
    %cst_3 = arith.constant 1.000000e+00 : f32
    %cst_4 = arith.constant 0.000000e+00 : f32
    %11 = vector.broadcast %cst_3 : f32 to vector<128x128xf32>
    %12 = vector.broadcast %cst_4 : f32 to vector<128x128xf32>
    %13 = arith.select %10, %11, %12 : vector<128x128xi1>, vector<128x128xf32>
    %14 = arith.truncf %13 : vector<128x128xf32> to vector<128x128xbf16>
    %cst_5 = arith.constant dense<0.000000e+00> : vector<128x128xf32>
    %15 = tpu.matmul %8, %14, %cst_5 {dimension_numbers = #tpu.dot_dimension_numbers<[1], [1], [0], [0], [0, 0, 1, 0], [], []>} : vector<128x128xbf16>, vector<128x128xbf16>, vector<128x128xf32> -> vector<128x128xf32>
    %16 = tpu.iota {dimensions = array<i32: 0>} : vector<128x128xi32>
    %17 = tpu.iota {dimensions = array<i32: 1>} : vector<128x128xi32>
    %18 = arith.cmpi eq, %16, %17 : vector<128x128xi32>
    %cst_6 = arith.constant 1.000000e+00 : f32
    %cst_7 = arith.constant 0.000000e+00 : f32
    %19 = vector.broadcast %cst_6 : f32 to vector<128x128xf32>
    %20 = vector.broadcast %cst_7 : f32 to vector<128x128xf32>
    %21 = arith.select %18, %19, %20 : vector<128x128xi1>, vector<128x128xf32>
    %22 = tpu.transpose %15, [1, 0] : vector<128x128xf32> -> vector<128x128xf32>
    %23 = arith.addf %15, %22 : vector<128x128xf32>
    %cst_8 = arith.constant 1.000000e+00 : f32
    %24 = vector.broadcast %cst_8 : f32 to vector<128x128xf32>
    %25 = arith.minimumf %23, %24 : vector<128x128xf32>
    %26 = arith.addf %25, %21 : vector<128x128xf32>
    %cst_9 = arith.constant dense<0.000000e+00> : vector<128xf32>
    %27 = vector.multi_reduction <add>, %26, %cst_9 [0] : vector<128x128xf32> to vector<128xf32>
    %28 = vector.shape_cast %27 : vector<128xf32> to vector<1x128xf32>
    %cst_10 = arith.constant 1.000000e+00 : f32
    %29 = vector.broadcast %cst_10 : f32 to vector<1x128xf32>
    %30 = arith.maximumf %28, %29 : vector<1x128xf32>
    %31 = math.rsqrt %30 : vector<1x128xf32>
    %cst_11 = arith.constant 1.000000e+00 : bf16
    %32 = vector.broadcast %cst_11 : bf16 to vector<128x128xbf16>
    %33 = arith.truncf %26 : vector<128x128xf32> to vector<128x128xbf16>
    %cst_12 = arith.constant dense<0.000000e+00> : vector<128x128xf32>
    %34 = tpu.matmul %33, %32, %cst_12 {dimension_numbers = #tpu.dot_dimension_numbers<[1], [0], [0], [1], [0, 0, 1, 1], [], []>} : vector<128x128xbf16>, vector<128x128xbf16>, vector<128x128xf32> -> vector<128x128xf32>
    %35 = vector.extract_strided_slice %34 {offsets = [0, 0], sizes = [128, 1], strides = [1, 1]} : vector<128x128xf32> to vector<128x1xf32>
    %cst_13 = arith.constant 1.000000e+00 : f32
    %36 = vector.broadcast %cst_13 : f32 to vector<128x1xf32>
    %37 = arith.maximumf %35, %36 : vector<128x1xf32>
    %38 = math.rsqrt %37 : vector<128x1xf32>
    %39 = vector.broadcast %38 : vector<128x1xf32> to vector<128x128xf32>
    %40 = arith.mulf %26, %39 : vector<128x128xf32>
    %41 = vector.broadcast %31 : vector<1x128xf32> to vector<128x128xf32>
    %42 = arith.mulf %40, %41 : vector<128x128xf32>
    %43 = arith.truncf %42 : vector<128x128xf32> to vector<128x128xbf16>
    %c0_14 = arith.constant 0 : index
    %c0_15 = arith.constant 0 : index
    %44 = vector.load %arg1[%c0_14, %c0_15] : memref<128x128xbf16, #tpu.memory_space<vmem>>, vector<128x128xbf16>
    tpu.vector_store %arg1[%c0_14, %c0_15], %43 {strides = array<i32>} : memref<128x128xbf16, #tpu.memory_space<vmem>>, vector<128x128xbf16>,
    return
  }
}

module attributes {stable_mosaic.version = 11 : i64} {
  func.func @_project_kernel(%arg0: i32, %arg1: memref<128x128xbf16, #tpu.memory_space<vmem>>, %arg2: memref<128x128xbf16, #tpu.memory_space<vmem>>, %arg3: memref<128x128xbf16, #tpu.memory_space<vmem>>) attributes {dimension_semantics = [#tpu.dimension_semantics<parallel>], iteration_bounds = array<i64: 1>, scalar_prefetch = 0 : i64, scratch_operands = 0 : i64, tpu.core_type = #tpu.core_type<tc>, window_params = [{transform_indices = @transform_0, window_bounds = array<i64: 128, 128>}, {pipeline_mode = #tpu.pipeline_mode<synchronous>, transform_indices = @transform_1, window_bounds = array<i64: 128, 128>}, {transform_indices = @transform_2, window_bounds = array<i64: 128, 128>}]} {
    %c0 = arith.constant 0 : index
    %c0_0 = arith.constant 0 : index
    %0 = vector.load %arg1[%c0, %c0_0] : memref<128x128xbf16, #tpu.memory_space<vmem>>, vector<128x128xbf16>
    %c0_1 = arith.constant 0 : index
    %c0_2 = arith.constant 0 : index
    %1 = vector.load %arg2[%c0_1, %c0_2] : memref<128x128xbf16, #tpu.memory_space<vmem>>, vector<128x128xbf16>
    %cst = arith.constant dense<0.000000e+00> : vector<128x128xf32>
    %2 = tpu.matmul %0, %1, %cst {dimension_numbers = #tpu.dot_dimension_numbers<[1], [0], [0], [1], [0, 0, 1, 1], [], []>} : vector<128x128xbf16>, vector<128x128xbf16>, vector<128x128xf32> -> vector<128x128xf32>
    %3 = arith.truncf %2 : vector<128x128xf32> to vector<128x128xbf16>
    %c0_3 = arith.constant 0 : index
    %c0_4 = arith.constant 0 : index
    %4 = vector.load %arg3[%c0_3, %c0_4] : memref<128x128xbf16, #tpu.memory_space<vmem>>, vector<128x128xbf16>
    tpu.vector_store %arg3[%c0_3, %c0_4], %3 {strides = array<i32>} : memref<128x128xbf16, #tpu.memory_space<vmem>>, vector<128x128xbf16>,
    return
  }
  func.func @transform_0(%arg0: i32) -> (i32, i32) {
    %c0_i32 = arith.constant 0 : i32
    %c0_i32_0 = arith.constant 0 : i32
    return %arg0, %c0_i32 : i32, i32
  }
  func.func @transform_1(%arg0: i32) -> (i32, i32) {
    %c0_i32 = arith.constant 0 : i32
    %c0_i32_0 = arith.constant 0 : i32
    %c0_i32_1 = arith.constant 0 : i32
    return %c0_i32, %c0_i32_0 : i32, i32
  }
  func.func @transform_2(%arg0: i32) -> (i32, i32) {
    %c0_i32 = arith.constant 0 : i32
    %c0_i32_0 = arith.constant 0 : i32
    return %arg0, %c0_i32 : i32, i32
  }
}

module attributes {stable_mosaic.version = 11 : i64} {
  func.func @_agg_relu_project_kernel(%arg0: i32, %arg1: memref<128x128xbf16, #tpu.memory_space<vmem>>, %arg2: memref<128x128xbf16, #tpu.memory_space<vmem>>, %arg3: memref<1x128xf32, #tpu.memory_space<vmem>>, %arg4: memref<128x128xbf16, #tpu.memory_space<vmem>>, %arg5: memref<128x128xbf16, #tpu.memory_space<vmem>>) attributes {dimension_semantics = [#tpu.dimension_semantics<parallel>], iteration_bounds = array<i64: 1>, scalar_prefetch = 0 : i64, scratch_operands = 0 : i64, tpu.core_type = #tpu.core_type<tc>, window_params = [{transform_indices = @transform_0, window_bounds = array<i64: 128, 128>}, {pipeline_mode = #tpu.pipeline_mode<synchronous>, transform_indices = @transform_1, window_bounds = array<i64: 128, 128>}, {pipeline_mode = #tpu.pipeline_mode<synchronous>, transform_indices = @transform_2, window_bounds = array<i64: 1, 128>}, {pipeline_mode = #tpu.pipeline_mode<synchronous>, transform_indices = @transform_3, window_bounds = array<i64: 128, 128>}, {transform_indices = @transform_4, window_bounds = array<i64: 128, 128>}]} {
    %c0 = arith.constant 0 : index
    %c0_0 = arith.constant 0 : index
    %0 = vector.load %arg1[%c0, %c0_0] : memref<128x128xbf16, #tpu.memory_space<vmem>>, vector<128x128xbf16>
    %c0_1 = arith.constant 0 : index
    %c0_2 = arith.constant 0 : index
    %1 = vector.load %arg2[%c0_1, %c0_2] : memref<128x128xbf16, #tpu.memory_space<vmem>>, vector<128x128xbf16>
    %cst = arith.constant dense<0.000000e+00> : vector<128x128xf32>
    %2 = tpu.matmul %0, %1, %cst {dimension_numbers = #tpu.dot_dimension_numbers<[1], [0], [0], [1], [0, 0, 1, 1], [], []>} : vector<128x128xbf16>, vector<128x128xbf16>, vector<128x128xf32> -> vector<128x128xf32>
    %c0_3 = arith.constant 0 : index
    %c0_4 = arith.constant 0 : index
    %3 = vector.load %arg3[%c0_3, %c0_4] : memref<1x128xf32, #tpu.memory_space<vmem>>, vector<1x128xf32>
    %4 = vector.broadcast %3 : vector<1x128xf32> to vector<128x128xf32>
    %5 = arith.addf %2, %4 : vector<128x128xf32>
    %cst_5 = arith.constant 0.000000e+00 : f32
    %6 = vector.broadcast %cst_5 : f32 to vector<128x128xf32>
    %7 = arith.maximumf %5, %6 : vector<128x128xf32>
    %8 = arith.truncf %7 : vector<128x128xf32> to vector<128x128xbf16>
    %c0_6 = arith.constant 0 : index
    %c0_7 = arith.constant 0 : index
    %9 = vector.load %arg4[%c0_6, %c0_7] : memref<128x128xbf16, #tpu.memory_space<vmem>>, vector<128x128xbf16>
    %cst_8 = arith.constant dense<0.000000e+00> : vector<128x128xf32>
    %10 = tpu.matmul %8, %9, %cst_8 {dimension_numbers = #tpu.dot_dimension_numbers<[1], [0], [0], [1], [0, 0, 1, 1], [], []>} : vector<128x128xbf16>, vector<128x128xbf16>, vector<128x128xf32> -> vector<128x128xf32>
    %11 = arith.truncf %10 : vector<128x128xf32> to vector<128x128xbf16>
    %c0_9 = arith.constant 0 : index
    %c0_10 = arith.constant 0 : index
    %12 = vector.load %arg5[%c0_9, %c0_10] : memref<128x128xbf16, #tpu.memory_space<vmem>>, vector<128x128xbf16>
    tpu.vector_store %arg5[%c0_9, %c0_10], %11 {strides = array<i32>} : memref<128x128xbf16, #tpu.memory_space<vmem>>, vector<128x128xbf16>,
    return
  }
  func.func @transform_0(%arg0: i32) -> (i32, i32) {
    %c0_i32 = arith.constant 0 : i32
    %c0_i32_0 = arith.constant 0 : i32
    return %arg0, %c0_i32 : i32, i32
  }
  func.func @transform_1(%arg0: i32) -> (i32, i32) {
    %c0_i32 = arith.constant 0 : i32
    %c0_i32_0 = arith.constant 0 : i32
    %c0_i32_1 = arith.constant 0 : i32
    return %c0_i32, %c0_i32_0 : i32, i32
  }
  func.func @transform_2(%arg0: i32) -> (i32, i32) {
    %c0_i32 = arith.constant 0 : i32
    %c0_i32_0 = arith.constant 0 : i32
    %c0_i32_1 = arith.constant 0 : i32
    return %c0_i32, %c0_i32_0 : i32, i32
  }
  func.func @transform_3(%arg0: i32) -> (i32, i32) {
    %c0_i32 = arith.constant 0 : i32
    %c0_i32_0 = arith.constant 0 : i32
    %c0_i32_1 = arith.constant 0 : i32
    return %c0_i32, %c0_i32_0 : i32, i32
  }
  func.func @transform_4(%arg0: i32) -> (i32, i32) {
    %c0_i32 = arith.constant 0 : i32
    %c0_i32_0 = arith.constant 0 : i32
    return %arg0, %c0_i32 : i32, i32
  }
}

module attributes {stable_mosaic.version = 11 : i64} {
  func.func @_agg_final_kernel(%arg0: i32, %arg1: memref<128x128xbf16, #tpu.memory_space<vmem>>, %arg2: memref<128x128xbf16, #tpu.memory_space<vmem>>, %arg3: memref<1x128xf32, #tpu.memory_space<vmem>>, %arg4: memref<128x128xf32, #tpu.memory_space<vmem>>) attributes {dimension_semantics = [#tpu.dimension_semantics<parallel>], iteration_bounds = array<i64: 1>, scalar_prefetch = 0 : i64, scratch_operands = 0 : i64, tpu.core_type = #tpu.core_type<tc>, window_params = [{transform_indices = @transform_0, window_bounds = array<i64: 128, 128>}, {pipeline_mode = #tpu.pipeline_mode<synchronous>, transform_indices = @transform_1, window_bounds = array<i64: 128, 128>}, {pipeline_mode = #tpu.pipeline_mode<synchronous>, transform_indices = @transform_2, window_bounds = array<i64: 1, 128>}, {transform_indices = @transform_3, window_bounds = array<i64: 128, 128>}]} {
    %c0 = arith.constant 0 : index
    %c0_0 = arith.constant 0 : index
    %0 = vector.load %arg1[%c0, %c0_0] : memref<128x128xbf16, #tpu.memory_space<vmem>>, vector<128x128xbf16>
    %c0_1 = arith.constant 0 : index
    %c0_2 = arith.constant 0 : index
    %1 = vector.load %arg2[%c0_1, %c0_2] : memref<128x128xbf16, #tpu.memory_space<vmem>>, vector<128x128xbf16>
    %cst = arith.constant dense<0.000000e+00> : vector<128x128xf32>
    %2 = tpu.matmul %0, %1, %cst {dimension_numbers = #tpu.dot_dimension_numbers<[1], [0], [0], [1], [0, 0, 1, 1], [], []>} : vector<128x128xbf16>, vector<128x128xbf16>, vector<128x128xf32> -> vector<128x128xf32>
    %c0_3 = arith.constant 0 : index
    %c0_4 = arith.constant 0 : index
    %3 = vector.load %arg3[%c0_3, %c0_4] : memref<1x128xf32, #tpu.memory_space<vmem>>, vector<1x128xf32>
    %4 = vector.broadcast %3 : vector<1x128xf32> to vector<128x128xf32>
    %5 = arith.addf %2, %4 : vector<128x128xf32>
    %c0_5 = arith.constant 0 : index
    %c0_6 = arith.constant 0 : index
    %6 = vector.load %arg4[%c0_5, %c0_6] : memref<128x128xf32, #tpu.memory_space<vmem>>, vector<128x128xf32>
    tpu.vector_store %arg4[%c0_5, %c0_6], %5 {strides = array<i32>} : memref<128x128xf32, #tpu.memory_space<vmem>>, vector<128x128xf32>,
    return
  }
  func.func @transform_0(%arg0: i32) -> (i32, i32) {
    %c0_i32 = arith.constant 0 : i32
    %c0_i32_0 = arith.constant 0 : i32
    return %arg0, %c0_i32 : i32, i32
  }
  func.func @transform_1(%arg0: i32) -> (i32, i32) {
    %c0_i32 = arith.constant 0 : i32
    %c0_i32_0 = arith.constant 0 : i32
    %c0_i32_1 = arith.constant 0 : i32
    return %c0_i32, %c0_i32_0 : i32, i32
  }
  func.func @transform_2(%arg0: i32) -> (i32, i32) {
    %c0_i32 = arith.constant 0 : i32
    %c0_i32_0 = arith.constant 0 : i32
    %c0_i32_1 = arith.constant 0 : i32
    return %c0_i32, %c0_i32_0 : i32, i32
  }
  func.func @transform_3(%arg0: i32) -> (i32, i32) {
    %c0_i32 = arith.constant 0 : i32
    %c0_i32_0 = arith.constant 0 : i32
    return %arg0, %c0_i32 : i32, i32
  }
}

</mosaic_0001>

<llo_original>
// kernel: gcn_encoder_forward.6
$region0: #{gcn_encoder_forward.6}
  #allocation0 [shape = 'u32[]', space=smem, size = 0x4, offset = 0x4, fixed_abs, tag = 'smem constant byte address 0x4 - core index']
  #allocation1 [shape = 'u32[144,128]{1,0:T(1,128)}', space=vmem, size = 0x12000, scoped, tag = 'internal scratch']
  %s0 = inlined_call_operand.vmem [shape: bf16[128,128], index: 0, kind: input, shape index: {}]
  %s1 = inlined_call_operand.vmem [shape: bf16[128,128], index: 1, kind: input, shape index: {}]
  %s2 = inlined_call_operand.vmem [shape: bf16[128,128], index: 2, kind: output, shape index: {}]
  %s3 = sld [smem:[#allocation0]]
  $region18: #{gcn_encoder_forward.6} parent=0
    _
  %s5 = ssub.s32 1, %s3
  %s6 = scalar_select 0, %s5, %s3
  // Predicated region
  $region2: #{gcn_encoder_forward.6} parent=0 // pred_check
    _
  $region3: #{gcn_encoder_forward.6} parent=0 // pred_check_branch
    %8 = sbr.rel (0) target = $region5
  $region4: #{gcn_encoder_forward.6} parent=0 // pred_region
    _
  $region5: #{gcn_encoder_forward.6} parent=0 // pred_fallthru
    _
  // Predicated region
  $region6: #{gcn_encoder_forward.6} parent=0 // pred_check
    _
  $region7: #{gcn_encoder_forward.6} parent=0 // pred_check_branch
    %10 = sbr.rel (0) target = $region9
  $region8: #{gcn_encoder_forward.6} parent=0 // pred_region
    _
  $region9: #{gcn_encoder_forward.6} parent=0 // pred_fallthru
    _
  %v12 = vld [vmem:[%s0] sm:$0xf]
  %v13 = vld [vmem:[%s0 + $0x4] sm:$0xf]
  %v14 = vld [vmem:[%s0 + $0x8] sm:$0xf]
  %v15 = vld [vmem:[%s0 + $0xc] sm:$0xf]
  %v16 = vld [vmem:[%s0 + $0x10] sm:$0xf]
  %v17 = vld [vmem:[%s0 + $0x14] sm:$0xf]
  %v18 = vld [vmem:[%s0 + $0x18] sm:$0xf]
  %v19 = vld [vmem:[%s0 + $0x1c] sm:$0xf]
  %v20 = vld [vmem:[%s0 + $0x20] sm:$0xf]
  %v21 = vld [vmem:[%s0 + $0x24] sm:$0xf]
  %v22 = vld [vmem:[%s0 + $0x28] sm:$0xf]
  %v23 = vld [vmem:[%s0 + $0x2c] sm:$0xf]
  %v24 = vld [vmem:[%s0 + $0x30] sm:$0xf]
  %v25 = vld [vmem:[%s0 + $0x34] sm:$0xf]
  %v26 = vld [vmem:[%s0 + $0x38] sm:$0xf]
  %v27 = vld [vmem:[%s0 + $0x3c] sm:$0xf]
  %v28 = vld [vmem:[%s1] sm:$0xf]
  %v29 = vld [vmem:[%s1 + $0x4] sm:$0xf]
  %v30 = vld [vmem:[%s1 + $0x8] sm:$0xf]
  %v31 = vld [vmem:[%s1 + $0xc] sm:$0xf]
  %v32 = vld [vmem:[%s1 + $0x10] sm:$0xf]
  %v33 = vld [vmem:[%s1 + $0x14] sm:$0xf]
  %v34 = vld [vmem:[%s1 + $0x18] sm:$0xf]
  %v35 = vld [vmem:[%s1 + $0x1c] sm:$0xf]
  %v36 = vld [vmem:[%s1 + $0x20] sm:$0xf]
  %v37 = vld [vmem:[%s1 + $0x24] sm:$0xf]
  %v38 = vld [vmem:[%s1 + $0x28] sm:$0xf]
  %v39 = vld [vmem:[%s1 + $0x2c] sm:$0xf]
  %v40 = vld [vmem:[%s1 + $0x30] sm:$0xf]
  %v41 = vld [vmem:[%s1 + $0x34] sm:$0xf]
  %v42 = vld [vmem:[%s1 + $0x38] sm:$0xf]
  %v43 = vld [vmem:[%s1 + $0x3c] sm:$0xf]
  %v60 = vunpack.c.l.b16 %v12
  %v61 = vunpack.c.l.b16 %v13
  %v62 = vunpack.c.l.b16 %v14
  %v63 = vunpack.c.l.b16 %v15
  %v64 = vunpack.c.l.b16 %v16
  %v65 = vunpack.c.l.b16 %v17
  %v66 = vunpack.c.l.b16 %v18
  %v67 = vunpack.c.l.b16 %v19
  %v68 = vunpack.c.l.b16 %v20
  %v69 = vunpack.c.l.b16 %v21
  %v70 = vunpack.c.l.b16 %v22
  %v71 = vunpack.c.l.b16 %v23
  %v72 = vunpack.c.l.b16 %v24
  %v73 = vunpack.c.l.b16 %v25
  %v74 = vunpack.c.l.b16 %v26
  %v75 = vunpack.c.l.b16 %v27
  %v76 = vpack.c.b16 %v61, %v60
  %v77 = vpack.c.b16 %v63, %v62
  %v78 = vpack.c.b16 %v65, %v64
  %v79 = vpack.c.b16 %v67, %v66
  %v80 = vpack.c.b16 %v69, %v68
  %v81 = vpack.c.b16 %v71, %v70
  %v82 = vpack.c.b16 %v73, %v72
  %v83 = vpack.c.b16 %v75, %v74
  %v108 = vunpack.c.l.b16 %v28
  %v109 = vunpack.c.l.b16 %v29
  %v110 = vunpack.c.l.b16 %v30
  %v111 = vunpack.c.l.b16 %v31
  %v112 = vunpack.c.l.b16 %v32
  %v113 = vunpack.c.l.b16 %v33
  %v114 = vunpack.c.l.b16 %v34
  %v115 = vunpack.c.l.b16 %v35
  %v116 = vunpack.c.l.b16 %v36
  %v117 = vunpack.c.l.b16 %v37
  %v118 = vunpack.c.l.b16 %v38
  %v119 = vunpack.c.l.b16 %v39
  %v120 = vunpack.c.l.b16 %v40
  %v121 = vunpack.c.l.b16 %v41
  %v122 = vunpack.c.l.b16 %v42
  %v123 = vunpack.c.l.b16 %v43
  %v124 = vpack.c.b16 %v109, %v108
  %v125 = vpack.c.b16 %v111, %v110
  %v126 = vpack.c.b16 %v113, %v112
  %v127 = vpack.c.b16 %v115, %v114
  %v128 = vpack.c.b16 %v117, %v116
  %v129 = vpack.c.b16 %v119, %v118
  %v130 = vpack.c.b16 %v121, %v120
  %v131 = vpack.c.b16 %v123, %v122
  %140 = vmatprep.subr.bf16.mxu0 0
  %141 = vmatpush1.bf16.msra.mxu0 %v131
  %142 = vmatprep.subr.bf16.mxu0 0
  %143 = vmatpush1.bf16.msra.mxu0 %v130
  %144 = vmatprep.subr.bf16.mxu0 0
  %145 = vmatpush1.bf16.msra.mxu0 %v129
  %146 = vmatprep.subr.bf16.mxu0 0
  %147 = vmatpush1.bf16.msra.mxu0 %v128
  %148 = vmatprep.subr.bf16.mxu0 0
  %149 = vmatpush1.bf16.msra.mxu0 %v127
  %150 = vmatprep.subr.bf16.mxu0 0
  %151 = vmatpush1.bf16.msra.mxu0 %v126
  %152 = vmatprep.subr.bf16.mxu0 0
  %153 = vmatpush1.bf16.msra.mxu0 %v125
  %154 = vmatprep.subr.bf16.mxu0 0
  %155 = vmatpush1.bf16.msra.mxu0 %v124
  %156 = vmatprep.subr.bf16.mxu0 0
  %157 = vmatpush2.bf16.msra.mxu0 0
  %158 = vmatprep.subr.bf16.mxu0 0
  %159 = vmatpush2.bf16.msra.mxu0 0
  %160 = vmatprep.subr.bf16.mxu0 0
  %161 = vmatpush2.bf16.msra.mxu0 0
  %162 = vmatprep.subr.bf16.mxu0 0
  %163 = vmatpush2.bf16.msra.mxu0 0
  %164 = vmatprep.subr.bf16.mxu0 0
  %165 = vmatpush2.bf16.msra.mxu0 0
  %166 = vmatprep.subr.bf16.mxu0 0
  %167 = vmatpush2.bf16.msra.mxu0 0
  %168 = vmatprep.subr.bf16.mxu0 0
  %169 = vmatpush2.bf16.msra.mxu0 0
  %170 = vmatprep.subr.bf16.mxu0 0
  %171 = vmatpush2.bf16.msra.mxu0 0
  %172 = vmatprep.mubr.bf16.mxu0 0
  %173 = vmatmul.mubr.bf16.gmra.mxu0 %v76
  %v174 = vpop.f32.mrf.mxu0
  %v175 = vadd.f32 0.0, %v174
  %v176 = vpop.f32.mrf.mxu0
  %v177 = vpop.f32.mrf.mxu0
  %v178 = vadd.f32 0.0, %v177
  %v179 = vpop.f32.mrf.mxu0
  %180 = vmatprep.mubr.bf16.mxu0 0
  %181 = vmatmul.mubr.bf16.gmra.mxu0 %v77
  %v182 = vpop.f32.mrf.mxu0
  %v183 = vadd.f32 0.0, %v182
  %v184 = vpop.f32.mrf.mxu0
  %v185 = vpop.f32.mrf.mxu0
  %v186 = vadd.f32 0.0, %v185
  %v187 = vpop.f32.mrf.mxu0
  %188 = vmatprep.mubr.bf16.mxu0 0
  %189 = vmatmul.mubr.bf16.gmra.mxu0 %v78
  %v190 = vpop.f32.mrf.mxu0
  %v191 = vadd.f32 0.0, %v190
  %v192 = vpop.f32.mrf.mxu0
  %v193 = vpop.f32.mrf.mxu0
  %v194 = vadd.f32 0.0, %v193
  %v195 = vpop.f32.mrf.mxu0
  %196 = vmatprep.mubr.bf16.mxu0 0
  %197 = vmatmul.mubr.bf16.gmra.mxu0 %v79
  %v198 = vpop.f32.mrf.mxu0
  %v199 = vadd.f32 0.0, %v198
  %v200 = vpop.f32.mrf.mxu0
  %v201 = vpop.f32.mrf.mxu0
  %v202 = vadd.f32 0.0, %v201
  %v203 = vpop.f32.mrf.mxu0
  %204 = vmatprep.mubr.bf16.mxu0 0
  %205 = vmatmul.mubr.bf16.gmra.mxu0 %v80
  %v206 = vpop.f32.mrf.mxu0
  %v207 = vadd.f32 0.0, %v206
  %v208 = vpop.f32.mrf.mxu0
  %v209 = vpop.f32.mrf.mxu0
  %v210 = vadd.f32 0.0, %v209
  %v211 = vpop.f32.mrf.mxu0
  %212 = vmatprep.mubr.bf16.mxu0 0
  %213 = vmatmul.mubr.bf16.gmra.mxu0 %v81
  %v214 = vpop.f32.mrf.mxu0
  %v215 = vadd.f32 0.0, %v214
  %v216 = vpop.f32.mrf.mxu0
  %v217 = vpop.f32.mrf.mxu0
  %v218 = vadd.f32 0.0, %v217
  %v219 = vpop.f32.mrf.mxu0
  %220 = vmatprep.mubr.bf16.mxu0 0
  %221 = vmatmul.mubr.bf16.gmra.mxu0 %v82
  %v222 = vpop.f32.mrf.mxu0
  %v223 = vadd.f32 0.0, %v222
  %v224 = vpop.f32.mrf.mxu0
  %v225 = vpop.f32.mrf.mxu0
  %v226 = vadd.f32 0.0, %v225
  %v227 = vpop.f32.mrf.mxu0
  %228 = vmatprep.mubr.bf16.mxu0 0
  %229 = vmatmul.mubr.bf16.gmra.mxu0 %v83
  %v230 = vpop.f32.mrf.mxu0
  %v231 = vadd.f32 0.0, %v230
  %v232 = vpop.f32.mrf.mxu0
  %v233 = vpop.f32.mrf.mxu0
  %v234 = vadd.f32 0.0, %v233
  %v235 = vpop.f32.mrf.mxu0
  %236 = vdwg.mxu0
  %v237 = vpack.c.bf16 %v178, %v175
  %v238 = vpack.c.bf16 %v186, %v183
  %v239 = vpack.c.bf16 %v194, %v191
  %v240 = vpack.c.bf16 %v202, %v199
  %v241 = vpack.c.bf16 %v210, %v207
  %v242 = vpack.c.bf16 %v218, %v215
  %v243 = vpack.c.bf16 %v226, %v223
  %v244 = vpack.c.bf16 %v234, %v231
  %v253 = vunpack.c.l.b16 %v237
  %v254 = vunpack.c.h.b16 %v237
  %v255 = vunpack.c.l.b16 %v238
  %v256 = vunpack.c.h.b16 %v238
  %v257 = vunpack.c.l.b16 %v239
  %v258 = vunpack.c.h.b16 %v239
  %v259 = vunpack.c.l.b16 %v240
  %v260 = vunpack.c.h.b16 %v240
  %v261 = vunpack.c.l.b16 %v241
  %v262 = vunpack.c.h.b16 %v241
  %v263 = vunpack.c.l.b16 %v242
  %v264 = vunpack.c.h.b16 %v242
  %v265 = vunpack.c.l.b16 %v243
  %v266 = vunpack.c.h.b16 %v243
  %v267 = vunpack.c.l.b16 %v244
  %v268 = vunpack.c.h.b16 %v244
  %v269 = vpack.c.b16 %v253, %v253
  %v270 = vpack.c.b16 %v254, %v254
  %v271 = vpack.c.b16 %v255, %v255
  %v272 = vpack.c.b16 %v256, %v256
  %v273 = vpack.c.b16 %v257, %v257
  %v274 = vpack.c.b16 %v258, %v258
  %v275 = vpack.c.b16 %v259, %v259
  %v276 = vpack.c.b16 %v260, %v260
  %v277 = vpack.c.b16 %v261, %v261
  %v278 = vpack.c.b16 %v262, %v262
  %v279 = vpack.c.b16 %v263, %v263
  %v280 = vpack.c.b16 %v264, %v264
  %v281 = vpack.c.b16 %v265, %v265
  %v282 = vpack.c.b16 %v266, %v266
  %v283 = vpack.c.b16 %v267, %v267
  %v284 = vpack.c.b16 %v268, %v268
  %301 = vst [vmem:[%s2] sm:$0xf] %v269
  %302 = vst [vmem:[%s2 + $0x4] sm:$0xf] %v270
  %303 = vst [vmem:[%s2 + $0x8] sm:$0xf] %v271
  %304 = vst [vmem:[%s2 + $0xc] sm:$0xf] %v272
  %305 = vst [vmem:[%s2 + $0x10] sm:$0xf] %v273
  %306 = vst [vmem:[%s2 + $0x14] sm:$0xf] %v274
  %307 = vst [vmem:[%s2 + $0x18] sm:$0xf] %v275
  %308 = vst [vmem:[%s2 + $0x1c] sm:$0xf] %v276
  %309 = vst [vmem:[%s2 + $0x20] sm:$0xf] %v277
  %310 = vst [vmem:[%s2 + $0x24] sm:$0xf] %v278
  %311 = vst [vmem:[%s2 + $0x28] sm:$0xf] %v279
  %312 = vst [vmem:[%s2 + $0x2c] sm:$0xf] %v280
  %313 = vst [vmem:[%s2 + $0x30] sm:$0xf] %v281
  %314 = vst [vmem:[%s2 + $0x34] sm:$0xf] %v282
  %315 = vst [vmem:[%s2 + $0x38] sm:$0xf] %v283
  %316 = vst [vmem:[%s2 + $0x3c] sm:$0xf] %v284
  // Predicated region
  $region10: #{gcn_encoder_forward.6} parent=0 // pred_check
    _
  $region11: #{gcn_encoder_forward.6} parent=0 // pred_check_branch
    %318 = sbr.rel (0) target = $region13
  $region12: #{gcn_encoder_forward.6} parent=0 // pred_region
    _
  $region13: #{gcn_encoder_forward.6} parent=0 // pred_fallthru
    _
  // Predicated region
  $region14: #{gcn_encoder_forward.6} parent=0 // pred_check
    _
  $region15: #{gcn_encoder_forward.6} parent=0 // pred_check_branch
    %320 = sbr.rel (0) target = $region17
  $region16: #{gcn_encoder_forward.6} parent=0 // pred_region
    _
  $region17: #{gcn_encoder_forward.6} parent=0 // pred_fallthru
    _

// kernel: gcn_encoder_forward.5
$region0: #{gcn_encoder_forward.5}
  #allocation0 [shape = 'u32[]', space=smem, size = 0x4, offset = 0x4, fixed_abs, tag = 'smem constant byte address 0x4 - core index']
  #allocation1 [shape = 'u32[144,128]{1,0:T(1,128)}', space=vmem, size = 0x12000, scoped, tag = 'internal scratch']
  %s0 = inlined_call_operand.vmem [shape: s32[2,128], index: 0, kind: input, shape index: {}]
  %s1 = inlined_call_operand.vmem [shape: bf16[128,128], index: 1, kind: output, shape index: {}]
  %s2 = sld [smem:[#allocation0]]
  $region14: #{gcn_encoder_forward.5} parent=0
    _
  %s4 = ssub.s32 1, %s2
  %s5 = scalar_select 0, %s4, %s2
  // Predicated region
  $region2: #{gcn_encoder_forward.5} parent=0 // pred_check
    _
  $region3: #{gcn_encoder_forward.5} parent=0 // pred_check_branch
    %7 = sbr.rel (0) target = $region5
  $region4: #{gcn_encoder_forward.5} parent=0 // pred_region
    _
  $region5: #{gcn_encoder_forward.5} parent=0 // pred_fallthru
    _
  %v10 = vld [vmem:[%s0] sm:$0x1]
  %v11 = vld [vmem:[%s0 + $0x1] sm:$0x1]
  %v12 = vlaneseq
  %v13 = vshrl.u32 %v12, 7
  %v14 = vadd.s32 %v13, 8
  %v15 = vadd.s32 %v13, 16
  %v16 = vadd.s32 %v13, 24
  %v17 = vadd.s32 %v13, 32
  %v18 = vadd.s32 %v13, 40
  %v19 = vadd.s32 %v13, 48
  %v20 = vadd.s32 %v13, 56
  %v21 = vadd.s32 %v13, 64
  %v22 = vadd.s32 %v13, 72
  %v23 = vadd.s32 %v13, 80
  %v24 = vadd.s32 %v13, 88
  %v25 = vadd.s32 %v13, 96
  %v26 = vadd.s32 %v13, 104
  %v27 = vadd.s32 %v13, 112
  %v28 = vadd.s32 %v13, 120
  %v29 = vlaneseq
  %v30 = vshrl.u32 %v29, 7
  %v31 = vsub.s32 0, %v30
  %v32 = vrot.slane %v10, %v31
  %vm33 = vcmp.eq.s32.totalorder %v13, %v32
  %vm34 = vcmp.eq.s32.totalorder %v14, %v32
  %vm35 = vcmp.eq.s32.totalorder %v15, %v32
  %vm36 = vcmp.eq.s32.totalorder %v16, %v32
  %vm37 = vcmp.eq.s32.totalorder %v17, %v32
  %vm38 = vcmp.eq.s32.totalorder %v18, %v32
  %vm39 = vcmp.eq.s32.totalorder %v19, %v32
  %vm40 = vcmp.eq.s32.totalorder %v20, %v32
  %vm41 = vcmp.eq.s32.totalorder %v21, %v32
  %vm42 = vcmp.eq.s32.totalorder %v22, %v32
  %vm43 = vcmp.eq.s32.totalorder %v23, %v32
  %vm44 = vcmp.eq.s32.totalorder %v24, %v32
  %vm45 = vcmp.eq.s32.totalorder %v25, %v32
  %vm46 = vcmp.eq.s32.totalorder %v26, %v32
  %vm47 = vcmp.eq.s32.totalorder %v27, %v32
  %vm48 = vcmp.eq.s32.totalorder %v28, %v32
  %v49 = vsel %vm33, 1.0, 0.0
  %v50 = vsel %vm34, 1.0, 0.0
  %v51 = vsel %vm35, 1.0, 0.0
  %v52 = vsel %vm36, 1.0, 0.0
  %v53 = vsel %vm37, 1.0, 0.0
  %v54 = vsel %vm38, 1.0, 0.0
  %v55 = vsel %vm39, 1.0, 0.0
  %v56 = vsel %vm40, 1.0, 0.0
  %v57 = vsel %vm41, 1.0, 0.0
  %v58 = vsel %vm42, 1.0, 0.0
  %v59 = vsel %vm43, 1.0, 0.0
  %v60 = vsel %vm44, 1.0, 0.0
  %v61 = vsel %vm45, 1.0, 0.0
  %v62 = vsel %vm46, 1.0, 0.0
  %v63 = vsel %vm47, 1.0, 0.0
  %v64 = vsel %vm48, 1.0, 0.0
  %v65 = vpack.c.bf16 %v50, %v49
  %v66 = vpack.c.bf16 %v52, %v51
  %v67 = vpack.c.bf16 %v54, %v53
  %v68 = vpack.c.bf16 %v56, %v55
  %v69 = vpack.c.bf16 %v58, %v57
  %v70 = vpack.c.bf16 %v60, %v59
  %v71 = vpack.c.bf16 %v62, %v61
  %v72 = vpack.c.bf16 %v64, %v63
  %v73 = vlaneseq
  %v74 = vshrl.u32 %v73, 7
  %v75 = vsub.s32 0, %v74
  %v76 = vrot.slane %v11, %v75
  %vm77 = vcmp.eq.s32.totalorder %v13, %v76
  %vm78 = vcmp.eq.s32.totalorder %v14, %v76
  %vm79 = vcmp.eq.s32.totalorder %v15, %v76
  %vm80 = vcmp.eq.s32.totalorder %v16, %v76
  %vm81 = vcmp.eq.s32.totalorder %v17, %v76
  %vm82 = vcmp.eq.s32.totalorder %v18, %v76
  %vm83 = vcmp.eq.s32.totalorder %v19, %v76
  %vm84 = vcmp.eq.s32.totalorder %v20, %v76
  %vm85 = vcmp.eq.s32.totalorder %v21, %v76
  %vm86 = vcmp.eq.s32.totalorder %v22, %v76
  %vm87 = vcmp.eq.s32.totalorder %v23, %v76
  %vm88 = vcmp.eq.s32.totalorder %v24, %v76
  %vm89 = vcmp.eq.s32.totalorder %v25, %v76
  %vm90 = vcmp.eq.s32.totalorder %v26, %v76
  %vm91 = vcmp.eq.s32.totalorder %v27, %v76
  %vm92 = vcmp.eq.s32.totalorder %v28, %v76
  %v93 = vsel %vm77, 1.0, 0.0
  %v94 = vsel %vm78, 1.0, 0.0
  %v95 = vsel %vm79, 1.0, 0.0
  %v96 = vsel %vm80, 1.0, 0.0
  %v97 = vsel %vm81, 1.0, 0.0
  %v98 = vsel %vm82, 1.0, 0.0
  %v99 = vsel %vm83, 1.0, 0.0
  %v100 = vsel %vm84, 1.0, 0.0
  %v101 = vsel %vm85, 1.0, 0.0
  %v102 = vsel %vm86, 1.0, 0.0
  %v103 = vsel %vm87, 1.0, 0.0
  %v104 = vsel %vm88, 1.0, 0.0
  %v105 = vsel %vm89, 1.0, 0.0
  %v106 = vsel %vm90, 1.0, 0.0
  %v107 = vsel %vm91, 1.0, 0.0
  %v108 = vsel %vm92, 1.0, 0.0
  %v109 = vpack.c.bf16 %v94, %v93
  %v110 = vpack.c.bf16 %v96, %v95
  %v111 = vpack.c.bf16 %v98, %v97
  %v112 = vpack.c.bf16 %v100, %v99
  %v113 = vpack.c.bf16 %v102, %v101
  %v114 = vpack.c.bf16 %v104, %v103
  %v115 = vpack.c.bf16 %v106, %v105
  %v116 = vpack.c.bf16 %v108, %v107
  %117 = vmatprep.subr.bf16.mxu0 0
  %118 = vmatpush1.bf16.xpose.msra.mxu0 %v116
  %119 = vmatprep.subr.bf16.mxu0 0
  %120 = vmatpush1.bf16.xpose.msra.mxu0 %v115
  %121 = vmatprep.subr.bf16.mxu0 0
  %122 = vmatpush1.bf16.xpose.msra.mxu0 %v114
  %123 = vmatprep.subr.bf16.mxu0 0
  %124 = vmatpush1.bf16.xpose.msra.mxu0 %v113
  %125 = vmatprep.subr.bf16.mxu0 0
  %126 = vmatpush1.bf16.xpose.msra.mxu0 %v112
  %127 = vmatprep.subr.bf16.mxu0 0
  %128 = vmatpush1.bf16.xpose.msra.mxu0 %v111
  %129 = vmatprep.subr.bf16.mxu0 0
  %130 = vmatpush1.bf16.xpose.msra.mxu0 %v110
  %131 = vmatprep.subr.bf16.mxu0 0
  %132 = vmatpush1.bf16.xpose.msra.mxu0 %v109
  %133 = vmatprep.subr.bf16.mxu0 0
  %134 = vmatpush2.bf16.xpose.msra.mxu0 0
  %135 = vmatprep.subr.bf16.mxu0 0
  %136 = vmatpush2.bf16.xpose.msra.mxu0 0
  %137 = vmatprep.subr.bf16.mxu0 0
  %138 = vmatpush2.bf16.xpose.msra.mxu0 0
  %139 = vmatprep.subr.bf16.mxu0 0
  %140 = vmatpush2.bf16.xpose.msra.mxu0 0
  %141 = vmatprep.subr.bf16.mxu0 0
  %142 = vmatpush2.bf16.xpose.msra.mxu0 0
  %143 = vmatprep.subr.bf16.mxu0 0
  %144 = vmatpush2.bf16.xpose.msra.mxu0 0
  %145 = vmatprep.subr.bf16.mxu0 0
  %146 = vmatpush2.bf16.xpose.msra.mxu0 0
  %147 = vmatprep.subr.bf16.mxu0 0
  %148 = vmatpush2.bf16.xpose.msra.mxu0 0
  %149 = vmatprep.mubr.bf16.mxu0 0
  %150 = vmatmul.mubr.bf16.gmra.mxu0 %v65
  %v151 = vpop.f32.mrf.mxu0
  %v152 = vadd.f32 0.0, %v151
  %v153 = vpop.f32.mrf.mxu0
  %v154 = vpop.f32.mrf.mxu0
  %v155 = vadd.f32 0.0, %v154
  %v156 = vpop.f32.mrf.mxu0
  %157 = vmatprep.mubr.bf16.mxu0 0
  %158 = vmatmul.mubr.bf16.gmra.mxu0 %v66
  %v159 = vpop.f32.mrf.mxu0
  %v160 = vadd.f32 0.0, %v159
  %v161 = vpop.f32.mrf.mxu0
  %v162 = vpop.f32.mrf.mxu0
  %v163 = vadd.f32 0.0, %v162
  %v164 = vpop.f32.mrf.mxu0
  %165 = vmatprep.mubr.bf16.mxu0 0
  %166 = vmatmul.mubr.bf16.gmra.mxu0 %v67
  %v167 = vpop.f32.mrf.mxu0
  %v168 = vadd.f32 0.0, %v167
  %v169 = vpop.f32.mrf.mxu0
  %v170 = vpop.f32.mrf.mxu0
  %v171 = vadd.f32 0.0, %v170
  %v172 = vpop.f32.mrf.mxu0
  %173 = vmatprep.mubr.bf16.mxu0 0
  %174 = vmatmul.mubr.bf16.gmra.mxu0 %v68
  %v175 = vpop.f32.mrf.mxu0
  %v176 = vadd.f32 0.0, %v175
  %v177 = vpop.f32.mrf.mxu0
  %v178 = vpop.f32.mrf.mxu0
  %v179 = vadd.f32 0.0, %v178
  %v180 = vpop.f32.mrf.mxu0
  %181 = vmatprep.mubr.bf16.mxu0 0
  %182 = vmatmul.mubr.bf16.gmra.mxu0 %v69
  %v183 = vpop.f32.mrf.mxu0
  %v184 = vadd.f32 0.0, %v183
  %v185 = vpop.f32.mrf.mxu0
  %v186 = vpop.f32.mrf.mxu0
  %v187 = vadd.f32 0.0, %v186
  %v188 = vpop.f32.mrf.mxu0
  %189 = vmatprep.mubr.bf16.mxu0 0
  %190 = vmatmul.mubr.bf16.gmra.mxu0 %v70
  %v191 = vpop.f32.mrf.mxu0
  %v192 = vadd.f32 0.0, %v191
  %v193 = vpop.f32.mrf.mxu0
  %v194 = vpop.f32.mrf.mxu0
  %v195 = vadd.f32 0.0, %v194
  %v196 = vpop.f32.mrf.mxu0
  %197 = vmatprep.mubr.bf16.mxu0 0
  %198 = vmatmul.mubr.bf16.gmra.mxu0 %v71
  %v199 = vpop.f32.mrf.mxu0
  %v200 = vadd.f32 0.0, %v199
  %v201 = vpop.f32.mrf.mxu0
  %v202 = vpop.f32.mrf.mxu0
  %v203 = vadd.f32 0.0, %v202
  %v204 = vpop.f32.mrf.mxu0
  %205 = vmatprep.mubr.bf16.mxu0 0
  %206 = vmatmul.mubr.bf16.gmra.mxu0 %v72
  %v207 = vpop.f32.mrf.mxu0
  %v208 = vadd.f32 0.0, %v207
  %v209 = vpop.f32.mrf.mxu0
  %v210 = vpop.f32.mrf.mxu0
  %v211 = vadd.f32 0.0, %v210
  %v212 = vpop.f32.mrf.mxu0
  %213 = vdwg.mxu0
  %v214 = vlaneseq
  %v215 = vand.u32 %v214, 127
  %vm216 = vcmp.eq.s32.totalorder %v13, %v215
  %vm217 = vcmp.eq.s32.totalorder %v14, %v215
  %vm218 = vcmp.eq.s32.totalorder %v15, %v215
  %vm219 = vcmp.eq.s32.totalorder %v16, %v215
  %vm220 = vcmp.eq.s32.totalorder %v17, %v215
  %vm221 = vcmp.eq.s32.totalorder %v18, %v215
  %vm222 = vcmp.eq.s32.totalorder %v19, %v215
  %vm223 = vcmp.eq.s32.totalorder %v20, %v215
  %vm224 = vcmp.eq.s32.totalorder %v21, %v215
  %vm225 = vcmp.eq.s32.totalorder %v22, %v215
  %vm226 = vcmp.eq.s32.totalorder %v23, %v215
  %vm227 = vcmp.eq.s32.totalorder %v24, %v215
  %vm228 = vcmp.eq.s32.totalorder %v25, %v215
  %vm229 = vcmp.eq.s32.totalorder %v26, %v215
  %vm230 = vcmp.eq.s32.totalorder %v27, %v215
  %vm231 = vcmp.eq.s32.totalorder %v28, %v215
  %v232 = vsel %vm216, 1.0, 0.0
  %v233 = vsel %vm217, 1.0, 0.0
  %v234 = vsel %vm218, 1.0, 0.0
  %v235 = vsel %vm219, 1.0, 0.0
  %v236 = vsel %vm220, 1.0, 0.0
  %v237 = vsel %vm221, 1.0, 0.0
  %v238 = vsel %vm222, 1.0, 0.0
  %v239 = vsel %vm223, 1.0, 0.0
  %v240 = vsel %vm224, 1.0, 0.0
  %v241 = vsel %vm225, 1.0, 0.0
  %v242 = vsel %vm226, 1.0, 0.0
  %v243 = vsel %vm227, 1.0, 0.0
  %v244 = vsel %vm228, 1.0, 0.0
  %v245 = vsel %vm229, 1.0, 0.0
  %v246 = vsel %vm230, 1.0, 0.0
  %v247 = vsel %vm231, 1.0, 0.0
  %248 = vxpose.xlu0.b32.start [1/16] %v152, 128
  %249 = vxpose.xlu0.b32.cont [2/16] %v155, 128
  %250 = vxpose.xlu0.b32.cont [3/16] %v160, 128
  %251 = vxpose.xlu0.b32.cont [4/16] %v163, 128
  %252 = vxpose.xlu0.b32.cont [5/16] %v168, 128
  %253 = vxpose.xlu0.b32.cont [6/16] %v171, 128
  %254 = vxpose.xlu0.b32.cont [7/16] %v176, 128
  %255 = vxpose.xlu0.b32.cont [8/16] %v179, 128
  %256 = vxpose.xlu0.b32.cont [9/16] %v184, 128
  %257 = vxpose.xlu0.b32.cont [10/16] %v187, 128
  %258 = vxpose.xlu0.b32.cont [11/16] %v192, 128
  %259 = vxpose.xlu0.b32.cont [12/16] %v195, 128
  %260 = vxpose.xlu0.b32.cont [13/16] %v200, 128
  %261 = vxpose.xlu0.b32.cont [14/16] %v203, 128
  %262 = vxpose.xlu0.b32.cont [15/16] %v208, 128
  %263 = vxpose.xlu0.b32.end [16/16] %v211, 128
  %v264 = vpop.trf.xlu0
  %v265 = vpop.trf.xlu0
  %v266 = vpop.trf.xlu0
  %v267 = vpop.trf.xlu0
  %v268 = vpop.trf.xlu0
  %v269 = vpop.trf.xlu0
  %v270 = vpop.trf.xlu0
  %v271 = vpop.trf.xlu0
  %v272 = vpop.trf.xlu0
  %v273 = vpop.trf.xlu0
  %v274 = vpop.trf.xlu0
  %v275 = vpop.trf.xlu0
  %v276 = vpop.trf.xlu0
  %v277 = vpop.trf.xlu0
  %v278 = vpop.trf.xlu0
  %v279 = vpop.trf.xlu0
  %v280 = vadd.f32 %v152, %v264
  %v281 = vadd.f32 %v155, %v265
  %v282 = vadd.f32 %v160, %v266
  %v283 = vadd.f32 %v163, %v267
  %v284 = vadd.f32 %v168, %v268
  %v285 = vadd.f32 %v171, %v269
  %v286 = vadd.f32 %v176, %v270
  %v287 = vadd.f32 %v179, %v271
  %v288 = vadd.f32 %v184, %v272
  %v289 = vadd.f32 %v187, %v273
  %v290 = vadd.f32 %v192, %v274
  %v291 = vadd.f32 %v195, %v275
  %v292 = vadd.f32 %v200, %v276
  %v293 = vadd.f32 %v203, %v277
  %v294 = vadd.f32 %v208, %v278
  %v295 = vadd.f32 %v211, %v279
  %v296 = vmin.f32 %v280, 1.0
  %v297 = vmin.f32 %v281, 1.0
  %v298 = vmin.f32 %v282, 1.0
  %v299 = vmin.f32 %v283, 1.0
  %v300 = vmin.f32 %v284, 1.0
  %v301 = vmin.f32 %v285, 1.0
  %v302 = vmin.f32 %v286, 1.0
  %v303 = vmin.f32 %v287, 1.0
  %v304 = vmin.f32 %v288, 1.0
  %v305 = vmin.f32 %v289, 1.0
  %v306 = vmin.f32 %v290, 1.0
  %v307 = vmin.f32 %v291, 1.0
  %v308 = vmin.f32 %v292, 1.0
  %v309 = vmin.f32 %v293, 1.0
  %v310 = vmin.f32 %v294, 1.0
  %v311 = vmin.f32 %v295, 1.0
  %v312 = vadd.f32 %v296, %v232
  %v313 = vadd.f32 %v297, %v233
  %v314 = vadd.f32 %v298, %v234
  %v315 = vadd.f32 %v299, %v235
  %v316 = vadd.f32 %v300, %v236
  %v317 = vadd.f32 %v301, %v237
  %v318 = vadd.f32 %v302, %v238
  %v319 = vadd.f32 %v303, %v239
  %v320 = vadd.f32 %v304, %v240
  %v321 = vadd.f32 %v305, %v241
  %v322 = vadd.f32 %v306, %v242
  %v323 = vadd.f32 %v307, %v243
  %v324 = vadd.f32 %v308, %v244
  %v325 = vadd.f32 %v309, %v245
  %v326 = vadd.f32 %v310, %v246
  %v327 = vadd.f32 %v311, %v247
  %v328 = vadd.f32 %v312, %v313
  %v329 = vadd.f32 %v328, %v314
  %v330 = vadd.f32 %v329, %v315
  %v331 = vadd.f32 %v330, %v316
  %v332 = vadd.f32 %v331, %v317
  %v333 = vadd.f32 %v332, %v318
  %v334 = vadd.f32 %v333, %v319
  %v335 = vadd.f32 %v334, %v320
  %v336 = vadd.f32 %v335, %v321
  %v337 = vadd.f32 %v336, %v322
  %v338 = vadd.f32 %v337, %v323
  %v339 = vadd.f32 %v338, %v324
  %v340 = vadd.f32 %v339, %v325
  %v341 = vadd.f32 %v340, %v326
  %v342 = vadd.f32 %v341, %v327
  %v343 = vrot.slane %v342, 4
  %v344 = vadd.f32 %v342, %v343
  %v345 = vrot.slane %v344, 2
  %v346 = vadd.f32 %v344, %v345
  %v347 = vrot.slane %v346, 1
  %v348 = vadd.f32 %v346, %v347
  %v349 = vmax.f32 %v348, 1.0
  %v350 = vrsqrt.pop %v349
  %v351 = vpack.c.bf16 %v313, %v312
  %v352 = vpack.c.bf16 %v315, %v314
  %v353 = vpack.c.bf16 %v317, %v316
  %v354 = vpack.c.bf16 %v319, %v318
  %v355 = vpack.c.bf16 %v321, %v320
  %v356 = vpack.c.bf16 %v323, %v322
  %v357 = vpack.c.bf16 %v325, %v324
  %v358 = vpack.c.bf16 %v327, %v326
  %359 = vmatprep.subr.bf16.mxu0 0
  %360 = vmatpush1.bf16.msra.mxu0 1065369472
  %361 = vmatprep.subr.bf16.mxu0 0
  %362 = vmatpush1.bf16.msra.mxu0 1065369472
  %363 = vmatprep.subr.bf16.mxu0 0
  %364 = vmatpush1.bf16.msra.mxu0 1065369472
  %365 = vmatprep.subr.bf16.mxu0 0
  %366 = vmatpush1.bf16.msra.mxu0 1065369472
  %367 = vmatprep.subr.bf16.mxu0 0
  %368 = vmatpush1.bf16.msra.mxu0 1065369472
  %369 = vmatprep.subr.bf16.mxu0 0
  %370 = vmatpush1.bf16.msra.mxu0 1065369472
  %371 = vmatprep.subr.bf16.mxu0 0
  %372 = vmatpush1.bf16.msra.mxu0 1065369472
  %373 = vmatprep.subr.bf16.mxu0 0
  %374 = vmatpush1.bf16.msra.mxu0 1065369472
  %375 = vmatprep.subr.bf16.mxu0 0
  %376 = vmatpush2.bf16.msra.mxu0 0
  %377 = vmatprep.subr.bf16.mxu0 0
  %378 = vmatpush2.bf16.msra.mxu0 0
  %379 = vmatprep.subr.bf16.mxu0 0
  %380 = vmatpush2.bf16.msra.mxu0 0
  %381 = vmatprep.subr.bf16.mxu0 0
  %382 = vmatpush2.bf16.msra.mxu0 0
  %383 = vmatprep.subr.bf16.mxu0 0
  %384 = vmatpush2.bf16.msra.mxu0 0
  %385 = vmatprep.subr.bf16.mxu0 0
  %386 = vmatpush2.bf16.msra.mxu0 0
  %387 = vmatprep.subr.bf16.mxu0 0
  %388 = vmatpush2.bf16.msra.mxu0 0
  %389 = vmatprep.subr.bf16.mxu0 0
  %390 = vmatpush2.bf16.msra.mxu0 0
  %391 = vmatprep.mubr.bf16.mxu0 0
  %392 = vmatmul.mubr.bf16.gmra.mxu0 %v351
  %v393 = vpop.f32.mrf.mxu0
  %v394 = vadd.f32 0.0, %v393
  %v395 = vpop.f32.mrf.mxu0
  %v396 = vpop.f32.mrf.mxu0
  %v397 = vadd.f32 0.0, %v396
  %v398 = vpop.f32.mrf.mxu0
  %399 = vmatprep.mubr.bf16.mxu0 0
  %400 = vmatmul.mubr.bf16.gmra.mxu0 %v352
  %v401 = vpop.f32.mrf.mxu0
  %v402 = vadd.f32 0.0, %v401
  %v403 = vpop.f32.mrf.mxu0
  %v404 = vpop.f32.mrf.mxu0
  %v405 = vadd.f32 0.0, %v404
  %v406 = vpop.f32.mrf.mxu0
  %407 = vmatprep.mubr.bf16.mxu0 0
  %408 = vmatmul.mubr.bf16.gmra.mxu0 %v353
  %v409 = vpop.f32.mrf.mxu0
  %v410 = vadd.f32 0.0, %v409
  %v411 = vpop.f32.mrf.mxu0
  %v412 = vpop.f32.mrf.mxu0
  %v413 = vadd.f32 0.0, %v412
  %v414 = vpop.f32.mrf.mxu0
  %415 = vmatprep.mubr.bf16.mxu0 0
  %416 = vmatmul.mubr.bf16.gmra.mxu0 %v354
  %v417 = vpop.f32.mrf.mxu0
  %v418 = vadd.f32 0.0, %v417
  %v419 = vpop.f32.mrf.mxu0
  %v420 = vpop.f32.mrf.mxu0
  %v421 = vadd.f32 0.0, %v420
  %v422 = vpop.f32.mrf.mxu0
  %423 = vmatprep.mubr.bf16.mxu0 0
  %424 = vmatmul.mubr.bf16.gmra.mxu0 %v355
  %v425 = vpop.f32.mrf.mxu0
  %v426 = vadd.f32 0.0, %v425
  %v427 = vpop.f32.mrf.mxu0
  %v428 = vpop.f32.mrf.mxu0
  %v429 = vadd.f32 0.0, %v428
  %v430 = vpop.f32.mrf.mxu0
  %431 = vmatprep.mubr.bf16.mxu0 0
  %432 = vmatmul.mubr.bf16.gmra.mxu0 %v356
  %v433 = vpop.f32.mrf.mxu0
  %v434 = vadd.f32 0.0, %v433
  %v435 = vpop.f32.mrf.mxu0
  %v436 = vpop.f32.mrf.mxu0
  %v437 = vadd.f32 0.0, %v436
  %v438 = vpop.f32.mrf.mxu0
  %439 = vmatprep.mubr.bf16.mxu0 0
  %440 = vmatmul.mubr.bf16.gmra.mxu0 %v357
  %v441 = vpop.f32.mrf.mxu0
  %v442 = vadd.f32 0.0, %v441
  %v443 = vpop.f32.mrf.mxu0
  %v444 = vpop.f32.mrf.mxu0
  %v445 = vadd.f32 0.0, %v444
  %v446 = vpop.f32.mrf.mxu0
  %447 = vmatprep.mubr.bf16.mxu0 0
  %448 = vmatmul.mubr.bf16.gmra.mxu0 %v358
  %v449 = vpop.f32.mrf.mxu0
  %v450 = vadd.f32 0.0, %v449
  %v451 = vpop.f32.mrf.mxu0
  %v452 = vpop.f32.mrf.mxu0
  %v453 = vadd.f32 0.0, %v452
  %v454 = vpop.f32.mrf.mxu0
  %455 = vdwg.mxu0
  %v456 = vmax.f32 %v394, 1.0
  %v457 = vmax.f32 %v397, 1.0
  %v458 = vmax.f32 %v402, 1.0
  %v459 = vmax.f32 %v405, 1.0
  %v460 = vmax.f32 %v410, 1.0
  %v461 = vmax.f32 %v413, 1.0
  %v462 = vmax.f32 %v418, 1.0
  %v463 = vmax.f32 %v421, 1.0
  %v464 = vmax.f32 %v426, 1.0
  %v465 = vmax.f32 %v429, 1.0
  %v466 = vmax.f32 %v434, 1.0
  %v467 = vmax.f32 %v437, 1.0
  %v468 = vmax.f32 %v442, 1.0
  %v469 = vmax.f32 %v445, 1.0
  %v470 = vmax.f32 %v450, 1.0
  %v471 = vmax.f32 %v453, 1.0
  %v472 = vrsqrt.pop %v456
  %v473 = vrsqrt.pop %v457
  %v474 = vrsqrt.pop %v458
  %v475 = vrsqrt.pop %v459
  %v476 = vrsqrt.pop %v460
  %v477 = vrsqrt.pop %v461
  %v478 = vrsqrt.pop %v462
  %v479 = vrsqrt.pop %v463
  %v480 = vrsqrt.pop %v464
  %v481 = vrsqrt.pop %v465
  %v482 = vrsqrt.pop %v466
  %v483 = vrsqrt.pop %v467
  %v484 = vrsqrt.pop %v468
  %v485 = vrsqrt.pop %v469
  %v486 = vrsqrt.pop %v470
  %v487 = vrsqrt.pop %v471
  %489 = vset.pattern.permute.xlu0 0
  %490 = vperm.xlu0 %489, %v472
  %v491 = vpop.permute.xlu0 %490
  %494 = vset.pattern.permute.xlu0 0
  %495 = vperm.xlu0 %494, %v473
  %v496 = vpop.permute.xlu0 %495
  %499 = vset.pattern.permute.xlu0 0
  %500 = vperm.xlu0 %499, %v474
  %v501 = vpop.permute.xlu0 %500
  %504 = vset.pattern.permute.xlu0 0
  %505 = vperm.xlu0 %504, %v475
  %v506 = vpop.permute.xlu0 %505
  %509 = vset.pattern.permute.xlu0 0
  %510 = vperm.xlu0 %509, %v476
  %v511 = vpop.permute.xlu0 %510
  %514 = vset.pattern.permute.xlu0 0
  %515 = vperm.xlu0 %514, %v477
  %v516 = vpop.permute.xlu0 %515
  %519 = vset.pattern.permute.xlu0 0
  %520 = vperm.xlu0 %519, %v478
  %v521 = vpop.permute.xlu0 %520
  %524 = vset.pattern.permute.xlu0 0
  %525 = vperm.xlu0 %524, %v479
  %v526 = vpop.permute.xlu0 %525
  %529 = vset.pattern.permute.xlu0 0
  %530 = vperm.xlu0 %529, %v480
  %v531 = vpop.permute.xlu0 %530
  %534 = vset.pattern.permute.xlu0 0
  %535 = vperm.xlu0 %534, %v481
  %v536 = vpop.permute.xlu0 %535
  %539 = vset.pattern.permute.xlu0 0
  %540 = vperm.xlu0 %539, %v482
  %v541 = vpop.permute.xlu0 %540
  %544 = vset.pattern.permute.xlu0 0
  %545 = vperm.xlu0 %544, %v483
  %v546 = vpop.permute.xlu0 %545
  %549 = vset.pattern.permute.xlu0 0
  %550 = vperm.xlu0 %549, %v484
  %v551 = vpop.permute.xlu0 %550
  %554 = vset.pattern.permute.xlu0 0
  %555 = vperm.xlu0 %554, %v485
  %v556 = vpop.permute.xlu0 %555
  %559 = vset.pattern.permute.xlu0 0
  %560 = vperm.xlu0 %559, %v486
  %v561 = vpop.permute.xlu0 %560
  %564 = vset.pattern.permute.xlu0 0
  %565 = vperm.xlu0 %564, %v487
  %v566 = vpop.permute.xlu0 %565
  %v568 = vmul.f32 %v312, %v491
  %v569 = vmul.f32 %v313, %v496
  %v570 = vmul.f32 %v314, %v501
  %v571 = vmul.f32 %v315, %v506
  %v572 = vmul.f32 %v316, %v511
  %v573 = vmul.f32 %v317, %v516
  %v574 = vmul.f32 %v318, %v521
  %v575 = vmul.f32 %v319, %v526
  %v576 = vmul.f32 %v320, %v531
  %v577 = vmul.f32 %v321, %v536
  %v578 = vmul.f32 %v322, %v541
  %v579 = vmul.f32 %v323, %v546
  %v580 = vmul.f32 %v324, %v551
  %v581 = vmul.f32 %v325, %v556
  %v582 = vmul.f32 %v326, %v561
  %v583 = vmul.f32 %v327, %v566
  %v584 = vmul.f32 %v568, %v350
  %v585 = vmul.f32 %v569, %v350
  %v586 = vmul.f32 %v570, %v350
  %v587 = vmul.f32 %v571, %v350
  %v588 = vmul.f32 %v572, %v350
  %v589 = vmul.f32 %v573, %v350
  %v590 = vmul.f32 %v574, %v350
  %v591 = vmul.f32 %v575, %v350
  %v592 = vmul.f32 %v576, %v350
  %v593 = vmul.f32 %v577, %v350
  %v594 = vmul.f32 %v578, %v350
  %v595 = vmul.f32 %v579, %v350
  %v596 = vmul.f32 %v580, %v350
  %v597 = vmul.f32 %v581, %v350
  %v598 = vmul.f32 %v582, %v350
  %v599 = vmul.f32 %v583, %v350
  %v600 = vpack.c.bf16 %v585, %v584
  %v601 = vpack.c.bf16 %v587, %v586
  %v602 = vpack.c.bf16 %v589, %v588
  %v603 = vpack.c.bf16 %v591, %v590
  %v604 = vpack.c.bf16 %v593, %v592
  %v605 = vpack.c.bf16 %v595, %v594
  %v606 = vpack.c.bf16 %v597, %v596
  %v607 = vpack.c.bf16 %v599, %v598
  %v616 = vunpack.c.l.b16 %v600
  %v617 = vunpack.c.h.b16 %v600
  %v618 = vunpack.c.l.b16 %v601
  %v619 = vunpack.c.h.b16 %v601
  %v620 = vunpack.c.l.b16 %v602
  %v621 = vunpack.c.h.b16 %v602
  %v622 = vunpack.c.l.b16 %v603
  %v623 = vunpack.c.h.b16 %v603
  %v624 = vunpack.c.l.b16 %v604
  %v625 = vunpack.c.h.b16 %v604
  %v626 = vunpack.c.l.b16 %v605
  %v627 = vunpack.c.h.b16 %v605
  %v628 = vunpack.c.l.b16 %v606
  %v629 = vunpack.c.h.b16 %v606
  %v630 = vunpack.c.l.b16 %v607
  %v631 = vunpack.c.h.b16 %v607
  %v632 = vpack.c.b16 %v616, %v616
  %v633 = vpack.c.b16 %v617, %v617
  %v634 = vpack.c.b16 %v618, %v618
  %v635 = vpack.c.b16 %v619, %v619
  %v636 = vpack.c.b16 %v620, %v620
  %v637 = vpack.c.b16 %v621, %v621
  %v638 = vpack.c.b16 %v622, %v622
  %v639 = vpack.c.b16 %v623, %v623
  %v640 = vpack.c.b16 %v624, %v624
  %v641 = vpack.c.b16 %v625, %v625
  %v642 = vpack.c.b16 %v626, %v626
  %v643 = vpack.c.b16 %v627, %v627
  %v644 = vpack.c.b16 %v628, %v628
  %v645 = vpack.c.b16 %v629, %v629
  %v646 = vpack.c.b16 %v630, %v630
  %v647 = vpack.c.b16 %v631, %v631
  %664 = vst [vmem:[%s1] sm:$0xf] %v632
  %665 = vst [vmem:[%s1 + $0x4] sm:$0xf] %v633
  %666 = vst [vmem:[%s1 + $0x8] sm:$0xf] %v634
  %667 = vst [vmem:[%s1 + $0xc] sm:$0xf] %v635
  %668 = vst [vmem:[%s1 + $0x10] sm:$0xf] %v636
  %669 = vst [vmem:[%s1 + $0x14] sm:$0xf] %v637
  %670 = vst [vmem:[%s1 + $0x18] sm:$0xf] %v638
  %671 = vst [vmem:[%s1 + $0x1c] sm:$0xf] %v639
  %672 = vst [vmem:[%s1 + $0x20] sm:$0xf] %v640
  %673 = vst [vmem:[%s1 + $0x24] sm:$0xf] %v641
  %674 = vst [vmem:[%s1 + $0x28] sm:$0xf] %v642
  %675 = vst [vmem:[%s1 + $0x2c] sm:$0xf] %v643
  %676 = vst [vmem:[%s1 + $0x30] sm:$0xf] %v644
  %677 = vst [vmem:[%s1 + $0x34] sm:$0xf] %v645
  %678 = vst [vmem:[%s1 + $0x38] sm:$0xf] %v646
  %679 = vst [vmem:[%s1 + $0x3c] sm:$0xf] %v647
  // Predicated region
  $region6: #{gcn_encoder_forward.5} parent=0 // pred_check
    _
  $region7: #{gcn_encoder_forward.5} parent=0 // pred_check_branch
    %681 = sbr.rel (0) target = $region9
  $region8: #{gcn_encoder_forward.5} parent=0 // pred_region
    _
  $region9: #{gcn_encoder_forward.5} parent=0 // pred_fallthru
    _
  // Predicated region
  $region10: #{gcn_encoder_forward.5} parent=0 // pred_check
    _
  $region11: #{gcn_encoder_forward.5} parent=0 // pred_check_branch
    %683 = sbr.rel (0) target = $region13
  $region12: #{gcn_encoder_forward.5} parent=0 // pred_region
    _
  $region13: #{gcn_encoder_forward.5} parent=0 // pred_fallthru
    _

// kernel: gcn_encoder_forward.7
$region0: #{gcn_encoder_forward.7}
  #allocation0 [shape = 'u32[]', space=smem, size = 0x4, offset = 0x4, fixed_abs, tag = 'smem constant byte address 0x4 - core index']
  #allocation1 [shape = 'u32[144,128]{1,0:T(1,128)}', space=vmem, size = 0x12000, scoped, tag = 'internal scratch']
  %s0 = inlined_call_operand.vmem [shape: bf16[128,128], index: 0, kind: input, shape index: {}]
  %s1 = inlined_call_operand.vmem [shape: bf16[128,128], index: 1, kind: input, shape index: {}]
  %s2 = inlined_call_operand.vmem [shape: f32[1,128], index: 2, kind: input, shape index: {}]
  %s3 = inlined_call_operand.vmem [shape: bf16[128,128], index: 3, kind: input, shape index: {}]
  %s4 = inlined_call_operand.vmem [shape: bf16[128,128], index: 4, kind: output, shape index: {}]
  %s5 = sld [smem:[#allocation0]]
  $region26: #{gcn_encoder_forward.7} parent=0
    _
  %s7 = ssub.s32 1, %s5
  %s8 = scalar_select 0, %s7, %s5
  // Predicated region
  $region2: #{gcn_encoder_forward.7} parent=0 // pred_check
    _
  $region3: #{gcn_encoder_forward.7} parent=0 // pred_check_branch
    %10 = sbr.rel (0) target = $region5
  $region4: #{gcn_encoder_forward.7} parent=0 // pred_region
    _
  $region5: #{gcn_encoder_forward.7} parent=0 // pred_fallthru
    _
  // Predicated region
  $region6: #{gcn_encoder_forward.7} parent=0 // pred_check
    _
  $region7: #{gcn_encoder_forward.7} parent=0 // pred_check_branch
    %12 = sbr.rel (0) target = $region9
  $region8: #{gcn_encoder_forward.7} parent=0 // pred_region
    _
  $region9: #{gcn_encoder_forward.7} parent=0 // pred_fallthru
    _
  // Predicated region
  $region10: #{gcn_encoder_forward.7} parent=0 // pred_check
    _
  $region11: #{gcn_encoder_forward.7} parent=0 // pred_check_branch
    %14 = sbr.rel (0) target = $region13
  $region12: #{gcn_encoder_forward.7} parent=0 // pred_region
    _
  $region13: #{gcn_encoder_forward.7} parent=0 // pred_fallthru
    _
  // Predicated region
  $region14: #{gcn_encoder_forward.7} parent=0 // pred_check
    _
  $region15: #{gcn_encoder_forward.7} parent=0 // pred_check_branch
    %16 = sbr.rel (0) target = $region17
  $region16: #{gcn_encoder_forward.7} parent=0 // pred_region
    _
  $region17: #{gcn_encoder_forward.7} parent=0 // pred_fallthru
    _
  %v18 = vld [vmem:[%s0] sm:$0xf]
  %v19 = vld [vmem:[%s0 + $0x4] sm:$0xf]
  %v20 = vld [vmem:[%s0 + $0x8] sm:$0xf]
  %v21 = vld [vmem:[%s0 + $0xc] sm:$0xf]
  %v22 = vld [vmem:[%s0 + $0x10] sm:$0xf]
  %v23 = vld [vmem:[%s0 + $0x14] sm:$0xf]
  %v24 = vld [vmem:[%s0 + $0x18] sm:$0xf]
  %v25 = vld [vmem:[%s0 + $0x1c] sm:$0xf]
  %v26 = vld [vmem:[%s0 + $0x20] sm:$0xf]
  %v27 = vld [vmem:[%s0 + $0x24] sm:$0xf]
  %v28 = vld [vmem:[%s0 + $0x28] sm:$0xf]
  %v29 = vld [vmem:[%s0 + $0x2c] sm:$0xf]
  %v30 = vld [vmem:[%s0 + $0x30] sm:$0xf]
  %v31 = vld [vmem:[%s0 + $0x34] sm:$0xf]
  %v32 = vld [vmem:[%s0 + $0x38] sm:$0xf]
  %v33 = vld [vmem:[%s0 + $0x3c] sm:$0xf]
  %v34 = vld [vmem:[%s1] sm:$0xf]
  %v35 = vld [vmem:[%s1 + $0x4] sm:$0xf]
  %v36 = vld [vmem:[%s1 + $0x8] sm:$0xf]
  %v37 = vld [vmem:[%s1 + $0xc] sm:$0xf]
  %v38 = vld [vmem:[%s1 + $0x10] sm:$0xf]
  %v39 = vld [vmem:[%s1 + $0x14] sm:$0xf]
  %v40 = vld [vmem:[%s1 + $0x18] sm:$0xf]
  %v41 = vld [vmem:[%s1 + $0x1c] sm:$0xf]
  %v42 = vld [vmem:[%s1 + $0x20] sm:$0xf]
  %v43 = vld [vmem:[%s1 + $0x24] sm:$0xf]
  %v44 = vld [vmem:[%s1 + $0x28] sm:$0xf]
  %v45 = vld [vmem:[%s1 + $0x2c] sm:$0xf]
  %v46 = vld [vmem:[%s1 + $0x30] sm:$0xf]
  %v47 = vld [vmem:[%s1 + $0x34] sm:$0xf]
  %v48 = vld [vmem:[%s1 + $0x38] sm:$0xf]
  %v49 = vld [vmem:[%s1 + $0x3c] sm:$0xf]
  %v50 = vld [vmem:[%s2] sm:$0x1]
  %v52 = vlaneseq
  %v53 = vshrl.u32 %v52, 7
  %v54 = vsub.s32 0, %v53
  %v55 = vrot.slane %v50, %v54
  %v73 = vunpack.c.l.b16 %v18
  %v74 = vunpack.c.l.b16 %v19
  %v75 = vunpack.c.l.b16 %v20
  %v76 = vunpack.c.l.b16 %v21
  %v77 = vunpack.c.l.b16 %v22
  %v78 = vunpack.c.l.b16 %v23
  %v79 = vunpack.c.l.b16 %v24
  %v80 = vunpack.c.l.b16 %v25
  %v81 = vunpack.c.l.b16 %v26
  %v82 = vunpack.c.l.b16 %v27
  %v83 = vunpack.c.l.b16 %v28
  %v84 = vunpack.c.l.b16 %v29
  %v85 = vunpack.c.l.b16 %v30
  %v86 = vunpack.c.l.b16 %v31
  %v87 = vunpack.c.l.b16 %v32
  %v88 = vunpack.c.l.b16 %v33
  %v89 = vpack.c.b16 %v74, %v73
  %v90 = vpack.c.b16 %v76, %v75
  %v91 = vpack.c.b16 %v78, %v77
  %v92 = vpack.c.b16 %v80, %v79
  %v93 = vpack.c.b16 %v82, %v81
  %v94 = vpack.c.b16 %v84, %v83
  %v95 = vpack.c.b16 %v86, %v85
  %v96 = vpack.c.b16 %v88, %v87
  %v121 = vunpack.c.l.b16 %v34
  %v122 = vunpack.c.l.b16 %v35
  %v123 = vunpack.c.l.b16 %v36
  %v124 = vunpack.c.l.b16 %v37
  %v125 = vunpack.c.l.b16 %v38
  %v126 = vunpack.c.l.b16 %v39
  %v127 = vunpack.c.l.b16 %v40
  %v128 = vunpack.c.l.b16 %v41
  %v129 = vunpack.c.l.b16 %v42
  %v130 = vunpack.c.l.b16 %v43
  %v131 = vunpack.c.l.b16 %v44
  %v132 = vunpack.c.l.b16 %v45
  %v133 = vunpack.c.l.b16 %v46
  %v134 = vunpack.c.l.b16 %v47
  %v135 = vunpack.c.l.b16 %v48
  %v136 = vunpack.c.l.b16 %v49
  %v137 = vpack.c.b16 %v122, %v121
  %v138 = vpack.c.b16 %v124, %v123
  %v139 = vpack.c.b16 %v126, %v125
  %v140 = vpack.c.b16 %v128, %v127
  %v141 = vpack.c.b16 %v130, %v129
  %v142 = vpack.c.b16 %v132, %v131
  %v143 = vpack.c.b16 %v134, %v133
  %v144 = vpack.c.b16 %v136, %v135
  %153 = vmatprep.subr.bf16.mxu0 0
  %154 = vmatpush1.bf16.msra.mxu0 %v144
  %155 = vmatprep.subr.bf16.mxu0 0
  %156 = vmatpush1.bf16.msra.mxu0 %v143
  %157 = vmatprep.subr.bf16.mxu0 0
  %158 = vmatpush1.bf16.msra.mxu0 %v142
  %159 = vmatprep.subr.bf16.mxu0 0
  %160 = vmatpush1.bf16.msra.mxu0 %v141
  %161 = vmatprep.subr.bf16.mxu0 0
  %162 = vmatpush1.bf16.msra.mxu0 %v140
  %163 = vmatprep.subr.bf16.mxu0 0
  %164 = vmatpush1.bf16.msra.mxu0 %v139
  %165 = vmatprep.subr.bf16.mxu0 0
  %166 = vmatpush1.bf16.msra.mxu0 %v138
  %167 = vmatprep.subr.bf16.mxu0 0
  %168 = vmatpush1.bf16.msra.mxu0 %v137
  %169 = vmatprep.subr.bf16.mxu0 0
  %170 = vmatpush2.bf16.msra.mxu0 0
  %171 = vmatprep.subr.bf16.mxu0 0
  %172 = vmatpush2.bf16.msra.mxu0 0
  %173 = vmatprep.subr.bf16.mxu0 0
  %174 = vmatpush2.bf16.msra.mxu0 0
  %175 = vmatprep.subr.bf16.mxu0 0
  %176 = vmatpush2.bf16.msra.mxu0 0
  %177 = vmatprep.subr.bf16.mxu0 0
  %178 = vmatpush2.bf16.msra.mxu0 0
  %179 = vmatprep.subr.bf16.mxu0 0
  %180 = vmatpush2.bf16.msra.mxu0 0
  %181 = vmatprep.subr.bf16.mxu0 0
  %182 = vmatpush2.bf16.msra.mxu0 0
  %183 = vmatprep.subr.bf16.mxu0 0
  %184 = vmatpush2.bf16.msra.mxu0 0
  %185 = vmatprep.mubr.bf16.mxu0 0
  %186 = vmatmul.mubr.bf16.gmra.mxu0 %v89
  %v187 = vpop.f32.mrf.mxu0
  %v188 = vadd.f32 %v55, %v187
  %v189 = vpop.f32.mrf.mxu0
  %v190 = vpop.f32.mrf.mxu0
  %v191 = vadd.f32 %v55, %v190
  %v192 = vpop.f32.mrf.mxu0
  %193 = vmatprep.mubr.bf16.mxu0 0
  %194 = vmatmul.mubr.bf16.gmra.mxu0 %v90
  %v195 = vpop.f32.mrf.mxu0
  %v196 = vadd.f32 %v55, %v195
  %v197 = vpop.f32.mrf.mxu0
  %v198 = vpop.f32.mrf.mxu0
  %v199 = vadd.f32 %v55, %v198
  %v200 = vpop.f32.mrf.mxu0
  %201 = vmatprep.mubr.bf16.mxu0 0
  %202 = vmatmul.mubr.bf16.gmra.mxu0 %v91
  %v203 = vpop.f32.mrf.mxu0
  %v204 = vadd.f32 %v55, %v203
  %v205 = vpop.f32.mrf.mxu0
  %v206 = vpop.f32.mrf.mxu0
  %v207 = vadd.f32 %v55, %v206
  %v208 = vpop.f32.mrf.mxu0
  %209 = vmatprep.mubr.bf16.mxu0 0
  %210 = vmatmul.mubr.bf16.gmra.mxu0 %v92
  %v211 = vpop.f32.mrf.mxu0
  %v212 = vadd.f32 %v55, %v211
  %v213 = vpop.f32.mrf.mxu0
  %v214 = vpop.f32.mrf.mxu0
  %v215 = vadd.f32 %v55, %v214
  %v216 = vpop.f32.mrf.mxu0
  %217 = vmatprep.mubr.bf16.mxu0 0
  %218 = vmatmul.mubr.bf16.gmra.mxu0 %v93
  %v219 = vpop.f32.mrf.mxu0
  %v220 = vadd.f32 %v55, %v219
  %v221 = vpop.f32.mrf.mxu0
  %v222 = vpop.f32.mrf.mxu0
  %v223 = vadd.f32 %v55, %v222
  %v224 = vpop.f32.mrf.mxu0
  %225 = vmatprep.mubr.bf16.mxu0 0
  %226 = vmatmul.mubr.bf16.gmra.mxu0 %v94
  %v227 = vpop.f32.mrf.mxu0
  %v228 = vadd.f32 %v55, %v227
  %v229 = vpop.f32.mrf.mxu0
  %v230 = vpop.f32.mrf.mxu0
  %v231 = vadd.f32 %v55, %v230
  %v232 = vpop.f32.mrf.mxu0
  %233 = vmatprep.mubr.bf16.mxu0 0
  %234 = vmatmul.mubr.bf16.gmra.mxu0 %v95
  %v235 = vpop.f32.mrf.mxu0
  %v236 = vadd.f32 %v55, %v235
  %v237 = vpop.f32.mrf.mxu0
  %v238 = vpop.f32.mrf.mxu0
  %v239 = vadd.f32 %v55, %v238
  %v240 = vpop.f32.mrf.mxu0
  %241 = vmatprep.mubr.bf16.mxu0 0
  %242 = vmatmul.mubr.bf16.gmra.mxu0 %v96
  %v243 = vpop.f32.mrf.mxu0
  %v244 = vadd.f32 %v55, %v243
  %v245 = vpop.f32.mrf.mxu0
  %v246 = vpop.f32.mrf.mxu0
  %v247 = vadd.f32 %v55, %v246
  %v248 = vpop.f32.mrf.mxu0
  %249 = vdwg.mxu0
  %v250 = vmax.f32 %v188, 0.0
  %v251 = vmax.f32 %v191, 0.0
  %v252 = vmax.f32 %v196, 0.0
  %v253 = vmax.f32 %v199, 0.0
  %v254 = vmax.f32 %v204, 0.0
  %v255 = vmax.f32 %v207, 0.0
  %v256 = vmax.f32 %v212, 0.0
  %v257 = vmax.f32 %v215, 0.0
  %v258 = vmax.f32 %v220, 0.0
  %v259 = vmax.f32 %v223, 0.0
  %v260 = vmax.f32 %v228, 0.0
  %v261 = vmax.f32 %v231, 0.0
  %v262 = vmax.f32 %v236, 0.0
  %v263 = vmax.f32 %v239, 0.0
  %v264 = vmax.f32 %v244, 0.0
  %v265 = vmax.f32 %v247, 0.0
  %v266 = vpack.c.bf16 %v251, %v250
  %v267 = vpack.c.bf16 %v253, %v252
  %v268 = vpack.c.bf16 %v255, %v254
  %v269 = vpack.c.bf16 %v257, %v256
  %v270 = vpack.c.bf16 %v259, %v258
  %v271 = vpack.c.bf16 %v261, %v260
  %v272 = vpack.c.bf16 %v263, %v262
  %v273 = vpack.c.bf16 %v265, %v264
  %v274 = vld [vmem:[%s3] sm:$0xf]
  %v275 = vld [vmem:[%s3 + $0x4] sm:$0xf]
  %v276 = vld [vmem:[%s3 + $0x8] sm:$0xf]
  %v277 = vld [vmem:[%s3 + $0xc] sm:$0xf]
  %v278 = vld [vmem:[%s3 + $0x10] sm:$0xf]
  %v279 = vld [vmem:[%s3 + $0x14] sm:$0xf]
  %v280 = vld [vmem:[%s3 + $0x18] sm:$0xf]
  %v281 = vld [vmem:[%s3 + $0x1c] sm:$0xf]
  %v282 = vld [vmem:[%s3 + $0x20] sm:$0xf]
  %v283 = vld [vmem:[%s3 + $0x24] sm:$0xf]
  %v284 = vld [vmem:[%s3 + $0x28] sm:$0xf]
  %v285 = vld [vmem:[%s3 + $0x2c] sm:$0xf]
  %v286 = vld [vmem:[%s3 + $0x30] sm:$0xf]
  %v287 = vld [vmem:[%s3 + $0x34] sm:$0xf]
  %v288 = vld [vmem:[%s3 + $0x38] sm:$0xf]
  %v289 = vld [vmem:[%s3 + $0x3c] sm:$0xf]
  %v306 = vunpack.c.l.b16 %v274
  %v307 = vunpack.c.l.b16 %v275
  %v308 = vunpack.c.l.b16 %v276
  %v309 = vunpack.c.l.b16 %v277
  %v310 = vunpack.c.l.b16 %v278
  %v311 = vunpack.c.l.b16 %v279
  %v312 = vunpack.c.l.b16 %v280
  %v313 = vunpack.c.l.b16 %v281
  %v314 = vunpack.c.l.b16 %v282
  %v315 = vunpack.c.l.b16 %v283
  %v316 = vunpack.c.l.b16 %v284
  %v317 = vunpack.c.l.b16 %v285
  %v318 = vunpack.c.l.b16 %v286
  %v319 = vunpack.c.l.b16 %v287
  %v320 = vunpack.c.l.b16 %v288
  %v321 = vunpack.c.l.b16 %v289
  %v322 = vpack.c.b16 %v307, %v306
  %v323 = vpack.c.b16 %v309, %v308
  %v324 = vpack.c.b16 %v311, %v310
  %v325 = vpack.c.b16 %v313, %v312
  %v326 = vpack.c.b16 %v315, %v314
  %v327 = vpack.c.b16 %v317, %v316
  %v328 = vpack.c.b16 %v319, %v318
  %v329 = vpack.c.b16 %v321, %v320
  %338 = vmatprep.subr.bf16.mxu0 0
  %339 = vmatpush1.bf16.msra.mxu0 %v329
  %340 = vmatprep.subr.bf16.mxu0 0
  %341 = vmatpush1.bf16.msra.mxu0 %v328
  %342 = vmatprep.subr.bf16.mxu0 0
  %343 = vmatpush1.bf16.msra.mxu0 %v327
  %344 = vmatprep.subr.bf16.mxu0 0
  %345 = vmatpush1.bf16.msra.mxu0 %v326
  %346 = vmatprep.subr.bf16.mxu0 0
  %347 = vmatpush1.bf16.msra.mxu0 %v325
  %348 = vmatprep.subr.bf16.mxu0 0
  %349 = vmatpush1.bf16.msra.mxu0 %v324
  %350 = vmatprep.subr.bf16.mxu0 0
  %351 = vmatpush1.bf16.msra.mxu0 %v323
  %352 = vmatprep.subr.bf16.mxu0 0
  %353 = vmatpush1.bf16.msra.mxu0 %v322
  %354 = vmatprep.subr.bf16.mxu0 0
  %355 = vmatpush2.bf16.msra.mxu0 0
  %356 = vmatprep.subr.bf16.mxu0 0
  %357 = vmatpush2.bf16.msra.mxu0 0
  %358 = vmatprep.subr.bf16.mxu0 0
  %359 = vmatpush2.bf16.msra.mxu0 0
  %360 = vmatprep.subr.bf16.mxu0 0
  %361 = vmatpush2.bf16.msra.mxu0 0
  %362 = vmatprep.subr.bf16.mxu0 0
  %363 = vmatpush2.bf16.msra.mxu0 0
  %364 = vmatprep.subr.bf16.mxu0 0
  %365 = vmatpush2.bf16.msra.mxu0 0
  %366 = vmatprep.subr.bf16.mxu0 0
  %367 = vmatpush2.bf16.msra.mxu0 0
  %368 = vmatprep.subr.bf16.mxu0 0
  %369 = vmatpush2.bf16.msra.mxu0 0
  %370 = vmatprep.mubr.bf16.mxu0 0
  %371 = vmatmul.mubr.bf16.gmra.mxu0 %v266
  %v372 = vpop.f32.mrf.mxu0
  %v373 = vadd.f32 0.0, %v372
  %v374 = vpop.f32.mrf.mxu0
  %v375 = vpop.f32.mrf.mxu0
  %v376 = vadd.f32 0.0, %v375
  %v377 = vpop.f32.mrf.mxu0
  %378 = vmatprep.mubr.bf16.mxu0 0
  %379 = vmatmul.mubr.bf16.gmra.mxu0 %v267
  %v380 = vpop.f32.mrf.mxu0
  %v381 = vadd.f32 0.0, %v380
  %v382 = vpop.f32.mrf.mxu0
  %v383 = vpop.f32.mrf.mxu0
  %v384 = vadd.f32 0.0, %v383
  %v385 = vpop.f32.mrf.mxu0
  %386 = vmatprep.mubr.bf16.mxu0 0
  %387 = vmatmul.mubr.bf16.gmra.mxu0 %v268
  %v388 = vpop.f32.mrf.mxu0
  %v389 = vadd.f32 0.0, %v388
  %v390 = vpop.f32.mrf.mxu0
  %v391 = vpop.f32.mrf.mxu0
  %v392 = vadd.f32 0.0, %v391
  %v393 = vpop.f32.mrf.mxu0
  %394 = vmatprep.mubr.bf16.mxu0 0
  %395 = vmatmul.mubr.bf16.gmra.mxu0 %v269
  %v396 = vpop.f32.mrf.mxu0
  %v397 = vadd.f32 0.0, %v396
  %v398 = vpop.f32.mrf.mxu0
  %v399 = vpop.f32.mrf.mxu0
  %v400 = vadd.f32 0.0, %v399
  %v401 = vpop.f32.mrf.mxu0
  %402 = vmatprep.mubr.bf16.mxu0 0
  %403 = vmatmul.mubr.bf16.gmra.mxu0 %v270
  %v404 = vpop.f32.mrf.mxu0
  %v405 = vadd.f32 0.0, %v404
  %v406 = vpop.f32.mrf.mxu0
  %v407 = vpop.f32.mrf.mxu0
  %v408 = vadd.f32 0.0, %v407
  %v409 = vpop.f32.mrf.mxu0
  %410 = vmatprep.mubr.bf16.mxu0 0
  %411 = vmatmul.mubr.bf16.gmra.mxu0 %v271
  %v412 = vpop.f32.mrf.mxu0
  %v413 = vadd.f32 0.0, %v412
  %v414 = vpop.f32.mrf.mxu0
  %v415 = vpop.f32.mrf.mxu0
  %v416 = vadd.f32 0.0, %v415
  %v417 = vpop.f32.mrf.mxu0
  %418 = vmatprep.mubr.bf16.mxu0 0
  %419 = vmatmul.mubr.bf16.gmra.mxu0 %v272
  %v420 = vpop.f32.mrf.mxu0
  %v421 = vadd.f32 0.0, %v420
  %v422 = vpop.f32.mrf.mxu0
  %v423 = vpop.f32.mrf.mxu0
  %v424 = vadd.f32 0.0, %v423
  %v425 = vpop.f32.mrf.mxu0
  %426 = vmatprep.mubr.bf16.mxu0 0
  %427 = vmatmul.mubr.bf16.gmra.mxu0 %v273
  %v428 = vpop.f32.mrf.mxu0
  %v429 = vadd.f32 0.0, %v428
  %v430 = vpop.f32.mrf.mxu0
  %v431 = vpop.f32.mrf.mxu0
  %v432 = vadd.f32 0.0, %v431
  %v433 = vpop.f32.mrf.mxu0
  %434 = vdwg.mxu0
  %v435 = vpack.c.bf16 %v376, %v373
  %v436 = vpack.c.bf16 %v384, %v381
  %v437 = vpack.c.bf16 %v392, %v389
  %v438 = vpack.c.bf16 %v400, %v397
  %v439 = vpack.c.bf16 %v408, %v405
  %v440 = vpack.c.bf16 %v416, %v413
  %v441 = vpack.c.bf16 %v424, %v421
  %v442 = vpack.c.bf16 %v432, %v429
  %v451 = vunpack.c.l.b16 %v435
  %v452 = vunpack.c.h.b16 %v435
  %v453 = vunpack.c.l.b16 %v436
  %v454 = vunpack.c.h.b16 %v436
  %v455 = vunpack.c.l.b16 %v437
  %v456 = vunpack.c.h.b16 %v437
  %v457 = vunpack.c.l.b16 %v438
  %v458 = vunpack.c.h.b16 %v438
  %v459 = vunpack.c.l.b16 %v439
  %v460 = vunpack.c.h.b16 %v439
  %v461 = vunpack.c.l.b16 %v440
  %v462 = vunpack.c.h.b16 %v440
  %v463 = vunpack.c.l.b16 %v441
  %v464 = vunpack.c.h.b16 %v441
  %v465 = vunpack.c.l.b16 %v442
  %v466 = vunpack.c.h.b16 %v442
  %v467 = vpack.c.b16 %v451, %v451
  %v468 = vpack.c.b16 %v452, %v452
  %v469 = vpack.c.b16 %v453, %v453
  %v470 = vpack.c.b16 %v454, %v454
  %v471 = vpack.c.b16 %v455, %v455
  %v472 = vpack.c.b16 %v456, %v456
  %v473 = vpack.c.b16 %v457, %v457
  %v474 = vpack.c.b16 %v458, %v458
  %v475 = vpack.c.b16 %v459, %v459
  %v476 = vpack.c.b16 %v460, %v460
  %v477 = vpack.c.b16 %v461, %v461
  %v478 = vpack.c.b16 %v462, %v462
  %v479 = vpack.c.b16 %v463, %v463
  %v480 = vpack.c.b16 %v464, %v464
  %v481 = vpack.c.b16 %v465, %v465
  %v482 = vpack.c.b16 %v466, %v466
  %499 = vst [vmem:[%s4] sm:$0xf] %v467
  %500 = vst [vmem:[%s4 + $0x4] sm:$0xf] %v468
  %501 = vst [vmem:[%s4 + $0x8] sm:$0xf] %v469
  %502 = vst [vmem:[%s4 + $0xc] sm:$0xf] %v470
  %503 = vst [vmem:[%s4 + $0x10] sm:$0xf] %v471
  %504 = vst [vmem:[%s4 + $0x14] sm:$0xf] %v472
  %505 = vst [vmem:[%s4 + $0x18] sm:$0xf] %v473
  %506 = vst [vmem:[%s4 + $0x1c] sm:$0xf] %v474
  %507 = vst [vmem:[%s4 + $0x20] sm:$0xf] %v475
  %508 = vst [vmem:[%s4 + $0x24] sm:$0xf] %v476
  %509 = vst [vmem:[%s4 + $0x28] sm:$0xf] %v477
  %510 = vst [vmem:[%s4 + $0x2c] sm:$0xf] %v478
  %511 = vst [vmem:[%s4 + $0x30] sm:$0xf] %v479
  %512 = vst [vmem:[%s4 + $0x34] sm:$0xf] %v480
  %513 = vst [vmem:[%s4 + $0x38] sm:$0xf] %v481
  %514 = vst [vmem:[%s4 + $0x3c] sm:$0xf] %v482
  // Predicated region
  $region18: #{gcn_encoder_forward.7} parent=0 // pred_check
    _
  $region19: #{gcn_encoder_forward.7} parent=0 // pred_check_branch
    %516 = sbr.rel (0) target = $region21
  $region20: #{gcn_encoder_forward.7} parent=0 // pred_region
    _
  $region21: #{gcn_encoder_forward.7} parent=0 // pred_fallthru
    _
  // Predicated region
  $region22: #{gcn_encoder_forward.7} parent=0 // pred_check
    _
  $region23: #{gcn_encoder_forward.7} parent=0 // pred_check_branch
    %518 = sbr.rel (0) target = $region25
  $region24: #{gcn_encoder_forward.7} parent=0 // pred_region
    _
  $region25: #{gcn_encoder_forward.7} parent=0 // pred_fallthru
    _

// kernel: gcn_encoder_forward.9
$region0: #{gcn_encoder_forward.9}
  #allocation0 [shape = 'u32[]', space=smem, size = 0x4, offset = 0x4, fixed_abs, tag = 'smem constant byte address 0x4 - core index']
  #allocation1 [shape = 'u32[144,128]{1,0:T(1,128)}', space=vmem, size = 0x12000, scoped, tag = 'internal scratch']
  %s0 = inlined_call_operand.vmem [shape: bf16[128,128], index: 0, kind: input, shape index: {}]
  %s1 = inlined_call_operand.vmem [shape: bf16[128,128], index: 1, kind: input, shape index: {}]
  %s2 = inlined_call_operand.vmem [shape: f32[1,128], index: 2, kind: input, shape index: {}]
  %s3 = inlined_call_operand.vmem [shape: f32[128,128], index: 3, kind: output, shape index: {}]
  %s4 = sld [smem:[#allocation0]]
  $region22: #{gcn_encoder_forward.9} parent=0
    _
  %s6 = ssub.s32 1, %s4
  %s7 = scalar_select 0, %s6, %s4
  // Predicated region
  $region2: #{gcn_encoder_forward.9} parent=0 // pred_check
    _
  $region3: #{gcn_encoder_forward.9} parent=0 // pred_check_branch
    %9 = sbr.rel (0) target = $region5
  $region4: #{gcn_encoder_forward.9} parent=0 // pred_region
    _
  $region5: #{gcn_encoder_forward.9} parent=0 // pred_fallthru
    _
  // Predicated region
  $region6: #{gcn_encoder_forward.9} parent=0 // pred_check
    _
  $region7: #{gcn_encoder_forward.9} parent=0 // pred_check_branch
    %11 = sbr.rel (0) target = $region9
  $region8: #{gcn_encoder_forward.9} parent=0 // pred_region
    _
  $region9: #{gcn_encoder_forward.9} parent=0 // pred_fallthru
    _
  // Predicated region
  $region10: #{gcn_encoder_forward.9} parent=0 // pred_check
    _
  $region11: #{gcn_encoder_forward.9} parent=0 // pred_check_branch
    %13 = sbr.rel (0) target = $region13
  $region12: #{gcn_encoder_forward.9} parent=0 // pred_region
    _
  $region13: #{gcn_encoder_forward.9} parent=0 // pred_fallthru
    _
  %v15 = vld [vmem:[%s0] sm:$0xf]
  %v16 = vld [vmem:[%s0 + $0x4] sm:$0xf]
  %v17 = vld [vmem:[%s0 + $0x8] sm:$0xf]
  %v18 = vld [vmem:[%s0 + $0xc] sm:$0xf]
  %v19 = vld [vmem:[%s0 + $0x10] sm:$0xf]
  %v20 = vld [vmem:[%s0 + $0x14] sm:$0xf]
  %v21 = vld [vmem:[%s0 + $0x18] sm:$0xf]
  %v22 = vld [vmem:[%s0 + $0x1c] sm:$0xf]
  %v23 = vld [vmem:[%s0 + $0x20] sm:$0xf]
  %v24 = vld [vmem:[%s0 + $0x24] sm:$0xf]
  %v25 = vld [vmem:[%s0 + $0x28] sm:$0xf]
  %v26 = vld [vmem:[%s0 + $0x2c] sm:$0xf]
  %v27 = vld [vmem:[%s0 + $0x30] sm:$0xf]
  %v28 = vld [vmem:[%s0 + $0x34] sm:$0xf]
  %v29 = vld [vmem:[%s0 + $0x38] sm:$0xf]
  %v30 = vld [vmem:[%s0 + $0x3c] sm:$0xf]
  %v31 = vld [vmem:[%s1] sm:$0xf]
  %v32 = vld [vmem:[%s1 + $0x4] sm:$0xf]
  %v33 = vld [vmem:[%s1 + $0x8] sm:$0xf]
  %v34 = vld [vmem:[%s1 + $0xc] sm:$0xf]
  %v35 = vld [vmem:[%s1 + $0x10] sm:$0xf]
  %v36 = vld [vmem:[%s1 + $0x14] sm:$0xf]
  %v37 = vld [vmem:[%s1 + $0x18] sm:$0xf]
  %v38 = vld [vmem:[%s1 + $0x1c] sm:$0xf]
  %v39 = vld [vmem:[%s1 + $0x20] sm:$0xf]
  %v40 = vld [vmem:[%s1 + $0x24] sm:$0xf]
  %v41 = vld [vmem:[%s1 + $0x28] sm:$0xf]
  %v42 = vld [vmem:[%s1 + $0x2c] sm:$0xf]
  %v43 = vld [vmem:[%s1 + $0x30] sm:$0xf]
  %v44 = vld [vmem:[%s1 + $0x34] sm:$0xf]
  %v45 = vld [vmem:[%s1 + $0x38] sm:$0xf]
  %v46 = vld [vmem:[%s1 + $0x3c] sm:$0xf]
  %v47 = vld [vmem:[%s2] sm:$0x1]
  %v49 = vlaneseq
  %v50 = vshrl.u32 %v49, 7
  %v51 = vsub.s32 0, %v50
  %v52 = vrot.slane %v47, %v51
  %v70 = vunpack.c.l.b16 %v15
  %v71 = vunpack.c.l.b16 %v16
  %v72 = vunpack.c.l.b16 %v17
  %v73 = vunpack.c.l.b16 %v18
  %v74 = vunpack.c.l.b16 %v19
  %v75 = vunpack.c.l.b16 %v20
  %v76 = vunpack.c.l.b16 %v21
  %v77 = vunpack.c.l.b16 %v22
  %v78 = vunpack.c.l.b16 %v23
  %v79 = vunpack.c.l.b16 %v24
  %v80 = vunpack.c.l.b16 %v25
  %v81 = vunpack.c.l.b16 %v26
  %v82 = vunpack.c.l.b16 %v27
  %v83 = vunpack.c.l.b16 %v28
  %v84 = vunpack.c.l.b16 %v29
  %v85 = vunpack.c.l.b16 %v30
  %v86 = vpack.c.b16 %v71, %v70
  %v87 = vpack.c.b16 %v73, %v72
  %v88 = vpack.c.b16 %v75, %v74
  %v89 = vpack.c.b16 %v77, %v76
  %v90 = vpack.c.b16 %v79, %v78
  %v91 = vpack.c.b16 %v81, %v80
  %v92 = vpack.c.b16 %v83, %v82
  %v93 = vpack.c.b16 %v85, %v84
  %v118 = vunpack.c.l.b16 %v31
  %v119 = vunpack.c.l.b16 %v32
  %v120 = vunpack.c.l.b16 %v33
  %v121 = vunpack.c.l.b16 %v34
  %v122 = vunpack.c.l.b16 %v35
  %v123 = vunpack.c.l.b16 %v36
  %v124 = vunpack.c.l.b16 %v37
  %v125 = vunpack.c.l.b16 %v38
  %v126 = vunpack.c.l.b16 %v39
  %v127 = vunpack.c.l.b16 %v40
  %v128 = vunpack.c.l.b16 %v41
  %v129 = vunpack.c.l.b16 %v42
  %v130 = vunpack.c.l.b16 %v43
  %v131 = vunpack.c.l.b16 %v44
  %v132 = vunpack.c.l.b16 %v45
  %v133 = vunpack.c.l.b16 %v46
  %v134 = vpack.c.b16 %v119, %v118
  %v135 = vpack.c.b16 %v121, %v120
  %v136 = vpack.c.b16 %v123, %v122
  %v137 = vpack.c.b16 %v125, %v124
  %v138 = vpack.c.b16 %v127, %v126
  %v139 = vpack.c.b16 %v129, %v128
  %v140 = vpack.c.b16 %v131, %v130
  %v141 = vpack.c.b16 %v133, %v132
  %150 = vmatprep.subr.bf16.mxu0 0
  %151 = vmatpush1.bf16.msra.mxu0 %v141
  %152 = vmatprep.subr.bf16.mxu0 0
  %153 = vmatpush1.bf16.msra.mxu0 %v140
  %154 = vmatprep.subr.bf16.mxu0 0
  %155 = vmatpush1.bf16.msra.mxu0 %v139
  %156 = vmatprep.subr.bf16.mxu0 0
  %157 = vmatpush1.bf16.msra.mxu0 %v138
  %158 = vmatprep.subr.bf16.mxu0 0
  %159 = vmatpush1.bf16.msra.mxu0 %v137
  %160 = vmatprep.subr.bf16.mxu0 0
  %161 = vmatpush1.bf16.msra.mxu0 %v136
  %162 = vmatprep.subr.bf16.mxu0 0
  %163 = vmatpush1.bf16.msra.mxu0 %v135
  %164 = vmatprep.subr.bf16.mxu0 0
  %165 = vmatpush1.bf16.msra.mxu0 %v134
  %166 = vmatprep.subr.bf16.mxu0 0
  %167 = vmatpush2.bf16.msra.mxu0 0
  %168 = vmatprep.subr.bf16.mxu0 0
  %169 = vmatpush2.bf16.msra.mxu0 0
  %170 = vmatprep.subr.bf16.mxu0 0
  %171 = vmatpush2.bf16.msra.mxu0 0
  %172 = vmatprep.subr.bf16.mxu0 0
  %173 = vmatpush2.bf16.msra.mxu0 0
  %174 = vmatprep.subr.bf16.mxu0 0
  %175 = vmatpush2.bf16.msra.mxu0 0
  %176 = vmatprep.subr.bf16.mxu0 0
  %177 = vmatpush2.bf16.msra.mxu0 0
  %178 = vmatprep.subr.bf16.mxu0 0
  %179 = vmatpush2.bf16.msra.mxu0 0
  %180 = vmatprep.subr.bf16.mxu0 0
  %181 = vmatpush2.bf16.msra.mxu0 0
  %182 = vmatprep.mubr.bf16.mxu0 0
  %183 = vmatmul.mubr.bf16.gmra.mxu0 %v86
  %v184 = vpop.f32.mrf.mxu0
  %v185 = vadd.f32 %v52, %v184
  %v186 = vpop.f32.mrf.mxu0
  %v187 = vpop.f32.mrf.mxu0
  %v188 = vadd.f32 %v52, %v187
  %v189 = vpop.f32.mrf.mxu0
  %190 = vmatprep.mubr.bf16.mxu0 0
  %191 = vmatmul.mubr.bf16.gmra.mxu0 %v87
  %v192 = vpop.f32.mrf.mxu0
  %v193 = vadd.f32 %v52, %v192
  %v194 = vpop.f32.mrf.mxu0
  %v195 = vpop.f32.mrf.mxu0
  %v196 = vadd.f32 %v52, %v195
  %v197 = vpop.f32.mrf.mxu0
  %198 = vmatprep.mubr.bf16.mxu0 0
  %199 = vmatmul.mubr.bf16.gmra.mxu0 %v88
  %v200 = vpop.f32.mrf.mxu0
  %v201 = vadd.f32 %v52, %v200
  %v202 = vpop.f32.mrf.mxu0
  %v203 = vpop.f32.mrf.mxu0
  %v204 = vadd.f32 %v52, %v203
  %v205 = vpop.f32.mrf.mxu0
  %206 = vmatprep.mubr.bf16.mxu0 0
  %207 = vmatmul.mubr.bf16.gmra.mxu0 %v89
  %v208 = vpop.f32.mrf.mxu0
  %v209 = vadd.f32 %v52, %v208
  %v210 = vpop.f32.mrf.mxu0
  %v211 = vpop.f32.mrf.mxu0
  %v212 = vadd.f32 %v52, %v211
  %v213 = vpop.f32.mrf.mxu0
  %214 = vmatprep.mubr.bf16.mxu0 0
  %215 = vmatmul.mubr.bf16.gmra.mxu0 %v90
  %v216 = vpop.f32.mrf.mxu0
  %v217 = vadd.f32 %v52, %v216
  %v218 = vpop.f32.mrf.mxu0
  %v219 = vpop.f32.mrf.mxu0
  %v220 = vadd.f32 %v52, %v219
  %v221 = vpop.f32.mrf.mxu0
  %222 = vmatprep.mubr.bf16.mxu0 0
  %223 = vmatmul.mubr.bf16.gmra.mxu0 %v91
  %v224 = vpop.f32.mrf.mxu0
  %v225 = vadd.f32 %v52, %v224
  %v226 = vpop.f32.mrf.mxu0
  %v227 = vpop.f32.mrf.mxu0
  %v228 = vadd.f32 %v52, %v227
  %v229 = vpop.f32.mrf.mxu0
  %230 = vmatprep.mubr.bf16.mxu0 0
  %231 = vmatmul.mubr.bf16.gmra.mxu0 %v92
  %v232 = vpop.f32.mrf.mxu0
  %v233 = vadd.f32 %v52, %v232
  %v234 = vpop.f32.mrf.mxu0
  %v235 = vpop.f32.mrf.mxu0
  %v236 = vadd.f32 %v52, %v235
  %v237 = vpop.f32.mrf.mxu0
  %238 = vmatprep.mubr.bf16.mxu0 0
  %239 = vmatmul.mubr.bf16.gmra.mxu0 %v93
  %v240 = vpop.f32.mrf.mxu0
  %v241 = vadd.f32 %v52, %v240
  %v242 = vpop.f32.mrf.mxu0
  %v243 = vpop.f32.mrf.mxu0
  %v244 = vadd.f32 %v52, %v243
  %v245 = vpop.f32.mrf.mxu0
  %246 = vdwg.mxu0
  %247 = vst [vmem:[%s3] sm:$0xff] %v185
  %248 = vst [vmem:[%s3 + $0x8] sm:$0xff] %v188
  %249 = vst [vmem:[%s3 + $0x10] sm:$0xff] %v193
  %250 = vst [vmem:[%s3 + $0x18] sm:$0xff] %v196
  %251 = vst [vmem:[%s3 + $0x20] sm:$0xff] %v201
  %252 = vst [vmem:[%s3 + $0x28] sm:$0xff] %v204
  %253 = vst [vmem:[%s3 + $0x30] sm:$0xff] %v209
  %254 = vst [vmem:[%s3 + $0x38] sm:$0xff] %v212
  %255 = vst [vmem:[%s3 + $0x40] sm:$0xff] %v217
  %256 = vst [vmem:[%s3 + $0x48] sm:$0xff] %v220
  %257 = vst [vmem:[%s3 + $0x50] sm:$0xff] %v225
  %258 = vst [vmem:[%s3 + $0x58] sm:$0xff] %v228
  %259 = vst [vmem:[%s3 + $0x60] sm:$0xff] %v233
  %260 = vst [vmem:[%s3 + $0x68] sm:$0xff] %v236
  %261 = vst [vmem:[%s3 + $0x70] sm:$0xff] %v241
  %262 = vst [vmem:[%s3 + $0x78] sm:$0xff] %v244
  // Predicated region
  $region14: #{gcn_encoder_forward.9} parent=0 // pred_check
    _
  $region15: #{gcn_encoder_forward.9} parent=0 // pred_check_branch
    %264 = sbr.rel (0) target = $region17
  $region16: #{gcn_encoder_forward.9} parent=0 // pred_region
    _
  $region17: #{gcn_encoder_forward.9} parent=0 // pred_fallthru
    _
  // Predicated region
  $region18: #{gcn_encoder_forward.9} parent=0 // pred_check
    _
  $region19: #{gcn_encoder_forward.9} parent=0 // pred_check_branch
    %266 = sbr.rel (0) target = $region21
  $region20: #{gcn_encoder_forward.9} parent=0 // pred_region
    _
  $region21: #{gcn_encoder_forward.9} parent=0 // pred_fallthru
    _

</llo_original>
